<compile_context>
chip_gen: v5e
topology: v5e:2x2
jax: 0.10.0
libtpu: 0.0.40
codegen_flags: <defaults>
</compile_context>

<pallas_src>
import math
import jax
import jax.numpy as jnp
from jax import lax
from jax.experimental import pallas as pl
from jax.experimental.pallas import tpu as pltpu


CHUNK_ROWS = 8          # one sublane tile per inner chunk
UNROLL_H2_MAX = 32      # fully unroll the harmonic loop up to this many freqs


def _round_up(x, m):
    return ((x + m - 1) // m) * m


def make_sine_encoding_kernel(k: int, h2: int, n_chunks: int):
    """k heads, h2 = hidden_dim // 2 frequencies per head,
    n_chunks 8-row sub-chunks per grid tile."""
    unroll_harmonics = h2 <= UNROLL_H2_MAX

    def kernel(ws_ref, wc_ref, b_ref, e_ref, out_ref):
        # ws_ref, wc_ref: [k, h2]   (SMEM)  sin / cos weights
        # b_ref:          [k]       (SMEM)  bias + folded ones-column weight
        # e_ref:          [BR, C]   (VMEM)  eigenvalue tile
        # out_ref:        [k, BR, C](VMEM)

        def chunk_body(ci, carry):
            r0 = pl.multiple_of(ci * CHUNK_ROWS, CHUNK_ROWS)
            e = e_ref[pl.ds(r0, CHUNK_ROWS), :]           # (8, C) working set
            ei = e                                        # running power e^(i+1)
            for i in range(k):                            # k small & static
                if i > 0:
                    ei = ei * e
                # Only 2 transcendentals per head per element (EUP slot).
                s1 = jnp.sin(ei)
                c1 = jnp.cos(ei)
                t = 2.0 * c1

                if unroll_harmonics:
                    # Clenshaw, fully unrolled; weights are static SMEM reads.
                    bs0, bs1 = ws_ref[i, h2 - 1], 0.0
                    bc0, bc1 = wc_ref[i, h2 - 1], 0.0
                    for j in range(h2 - 1, 0, -1):
                        bs0, bs1 = ws_ref[i, j - 1] + t * bs0 - bs1, bs0
                        bc0, bc1 = wc_ref[i, j - 1] + t * bc0 - bc1, bc0
                else:
                    # Large hidden_dim: modestly-unrolled fori_loop with
                    # dynamic SMEM weight reads (bounds code size / compile).
                    z = jnp.zeros_like(e)

                    def harm(jj, c4):
                        bs0_, bs1_, bc0_, bc1_ = c4
                        j = h2 - 1 - jj               # harmonic h2 .. 1
                        bs0_, bs1_ = ws_ref[i, j] + t * bs0_ - bs1_, bs0_
                        bc0_, bc1_ = wc_ref[i, j] + t * bc0_ - bc1_, bc0_
                        return bs0_, bs1_, bc0_, bc1_

                    bs0, bs1, bc0, bc1 = lax.fori_loop(
                        0, h2, harm, (z, z, z, z), unroll=4)

                # S_sin = sin(x)*b1_s ; S_cos = cos(x)*b1_c - b2_c
                acc = b_ref[i] + s1 * bs0 + (c1 * bc0 - bc1)
                # Unmasked, lane-dense store of the 8-row sub-slab.
                out_ref[i, pl.ds(r0, CHUNK_ROWS), :] = acc.astype(out_ref.dtype)
            return carry

        lax.fori_loop(0, n_chunks, chunk_body, 0)

    return kernel


def sine_encoding(e, weights, biases, hidden_dim, *,
                  lane_cols=512, block_rows=64, stacked=False):
    """e: [N] f32, weights: [k, hidden_dim+1] f32 laid out as
    [w_ones | w_sin(1..H/2) | w_cos(1..H/2)], biases: [k] f32.

    Returns a list of k arrays, each [N, 1] (matches the PyTorch module).
    stacked=True returns a single [k, N] array instead (avoids k extra
    per-head slices / copies if the consumer can take it).
    """
    k, fan_in = weights.shape
    assert hidden_dim % 2 == 0, "hidden_dim must be even (sin/cos halves)"
    assert fan_in == hidden_dim + 1
    h2 = hidden_dim // 2
    n = int(e.shape[0])

    # Host-side weight prep: fold ones column into bias, split sin/cos halves.
    w = weights.astype(jnp.float32)
    ws = w[:, 1:1 + h2]                               # [k, h2]
    wc = w[:, 1 + h2:1 + 2 * h2]                      # [k, h2]
    b_eff = biases.astype(jnp.float32) + w[:, 0]      # [k]

    # Dense 2-D layout for e: N -> (R, C); C on lanes, rows on sublanes.
    c = min(lane_cols, _round_up(max(n, 1), 128))
    rows = _round_up(pl.cdiv(n, c), CHUNK_ROWS)

    # Block rows: multiple of CHUNK_ROWS, big enough to amortize grid-step
    # overhead, capped so the grid keeps >= 2 steps when there is enough work
    # (v7x: 2 TensorCores share a "parallel" grid axis).
    br = max(CHUNK_ROWS, (min(block_rows, rows) // CHUNK_ROWS) * CHUNK_ROWS)
    if rows // br < 2 and rows >= 2 * CHUNK_ROWS:
        br = max(CHUNK_ROWS, ((rows // 2) // CHUNK_ROWS) * CHUNK_ROWS)
    r = _round_up(rows, br)

    n_pad = r * c
    e2d = jnp.pad(e.astype(jnp.float32), (0, n_pad - n)).reshape(r, c)

    out = pl.pallas_call(
        make_sine_encoding_kernel(k, h2, br // CHUNK_ROWS),
        out_shape=jax.ShapeDtypeStruct((k, r, c), jnp.float32),
        grid=(r // br,),
        in_specs=[
            pl.BlockSpec(memory_space=pltpu.MemorySpace.SMEM),     # ws  [k,h2]
            pl.BlockSpec(memory_space=pltpu.MemorySpace.SMEM),     # wc  [k,h2]
            pl.BlockSpec(memory_space=pltpu.MemorySpace.SMEM),     # b   [k]
            pl.BlockSpec((br, c), lambda rr: (rr, 0)),             # e tile
        ],
        out_specs=pl.BlockSpec((k, br, c), lambda rr: (0, rr, 0)),
        compiler_params=pltpu.CompilerParams(
            dimension_semantics=("parallel",),
            # Buffers are KB-scale; VMEM capacity is not the constraint on any
            # generation. 32 MiB leaves ample headroom incl. v7x.
            vmem_limit_bytes=32 * 1024 * 1024,
        ),
    )(ws, wc, b_eff, e2d)

    out_flat = out.reshape(k, n_pad)[:, :n]           # [k, N]
    if stacked:
        return out_flat
    return [out_flat[i][:, None] for i in range(k)]


def sine_encoding_ref(e, weights, biases, hidden_dim):
    """Pure-JAX reference mirroring the PyTorch forward."""
    k = weights.shape[0]
    h2 = hidden_dim // 2
    ee = e[:, None]
    div = jnp.arange(1, h2 + 1, dtype=jnp.float32)
    outs = []
    for i in range(k):
        ones = jnp.ones_like(ee)
        pe = (ee ** (i + 1)) * div
        feats = jnp.concatenate([ones, jnp.sin(pe), jnp.cos(pe)], axis=1)
        outs.append(feats @ weights[i][:, None] + biases[i])
    return outs


if __name__ == "__main__":
    def run_case(k, hidden_dim, n, rtol, atol, key):
        k_e, k_w, k_b = jax.random.split(key, 3)
        e = jax.random.uniform(k_e, (n,), dtype=jnp.float32,
                               minval=-1.0, maxval=1.0)
        fan_in = hidden_dim + 1
        bound = 1.0 / math.sqrt(fan_in)   # PyTorch-default Linear init range
        weights = jax.random.uniform(k_w, (k, fan_in), dtype=jnp.float32,
                                     minval=-bound, maxval=bound)
        biases = jax.random.uniform(k_b, (k,), dtype=jnp.float32,
                                    minval=-bound, maxval=bound)
        outs = sine_encoding(e, weights, biases, hidden_dim)
        outs = [jax.block_until_ready(o) for o in outs]
        refs = sine_encoding_ref(e, weights, biases, hidden_dim)
        for o, ref in zip(outs, refs):
            assert o.shape == (n, 1)
            err = float(jnp.max(jnp.abs(o - ref)))
            assert jnp.allclose(o, ref, rtol=rtol, atol=atol), err

    key1, key2 = jax.random.split(jax.random.PRNGKey(0))

    # Small shape consistent with the module (strict tolerance; unrolled path).
    run_case(k=3, hidden_dim=32, n=8, rtol=1e-5, atol=1e-5, key=key1)

    # Module-default hidden_dim=128 and larger N: exercises the fori_loop
    # harmonic path, the inner 8-row chunk loop, and padding/reshape logic.
    # Looser tolerance: Clenshaw drift vs per-harmonic range-reduced sin/cos.
    run_case(k=3, hidden_dim=128, n=1500, rtol=1e-3, atol=1e-3, key=key2)

    print("KERNEL_OK")
</pallas_src>

<mosaic_0001>
module attributes {stable_mosaic.version = 11 : i64} {
  func.func @kernel(%arg0: i32, %arg1: memref<3x16xf32, #tpu.memory_space<smem>>, %arg2: memref<3x16xf32, #tpu.memory_space<smem>>, %arg3: memref<3xf32, #tpu.memory_space<smem>>, %arg4: memref<8x128xf32, #tpu.memory_space<vmem>>, %arg5: memref<3x8x128xf32, #tpu.memory_space<vmem>>) attributes {dimension_semantics = [#tpu.dimension_semantics<parallel>], iteration_bounds = array<i64: 1>, scalar_prefetch = 0 : i64, scratch_operands = 0 : i64, tpu.core_type = #tpu.core_type<tc>, window_params = [{transform_indices = @transform_0, window_bounds = array<i64: 3, 16>}, {transform_indices = @transform_1, window_bounds = array<i64: 3, 16>}, {transform_indices = @transform_2, window_bounds = array<i64: 3>}, {transform_indices = @transform_3, window_bounds = array<i64: 8, 128>}, {transform_indices = @transform_4, window_bounds = array<i64: 3, 8, 128>}]} {
    %c0_i32 = arith.constant 0 : i32
    %c8_i32 = arith.constant 8 : i32
    %0 = arith.muli %c0_i32, %c8_i32 : i32
    %1 = tpu.assume_multiple %0, 8 : i32
    %2 = arith.index_cast %1 : i32 to index
    %c0 = arith.constant 0 : index
    %3 = vector.load %arg4[%2, %c0] : memref<8x128xf32, #tpu.memory_space<vmem>>, vector<8x128xf32>
    %4 = math.sin %3 : vector<8x128xf32>
    %5 = math.cos %3 : vector<8x128xf32>
    %cst = arith.constant 2.000000e+00 : f32
    %6 = vector.broadcast %cst : f32 to vector<8x128xf32>
    %7 = arith.mulf %6, %5 : vector<8x128xf32>
    %c0_0 = arith.constant 0 : index
    %c15 = arith.constant 15 : index
    %8 = memref.load %arg1[%c0_0, %c15] : memref<3x16xf32, #tpu.memory_space<smem>>
    %c0_1 = arith.constant 0 : index
    %c15_2 = arith.constant 15 : index
    %9 = memref.load %arg2[%c0_1, %c15_2] : memref<3x16xf32, #tpu.memory_space<smem>>
    %c0_3 = arith.constant 0 : index
    %c14 = arith.constant 14 : index
    %10 = memref.load %arg1[%c0_3, %c14] : memref<3x16xf32, #tpu.memory_space<smem>>
    %11 = vector.broadcast %8 : f32 to vector<8x128xf32>
    %12 = arith.mulf %7, %11 : vector<8x128xf32>
    %13 = vector.broadcast %10 : f32 to vector<8x128xf32>
    %14 = arith.addf %13, %12 : vector<8x128xf32>
    %cst_4 = arith.constant 0.000000e+00 : f32
    %15 = vector.broadcast %cst_4 : f32 to vector<8x128xf32>
    %16 = arith.subf %14, %15 : vector<8x128xf32>
    %c0_5 = arith.constant 0 : index
    %c14_6 = arith.constant 14 : index
    %17 = memref.load %arg2[%c0_5, %c14_6] : memref<3x16xf32, #tpu.memory_space<smem>>
    %18 = vector.broadcast %9 : f32 to vector<8x128xf32>
    %19 = arith.mulf %7, %18 : vector<8x128xf32>
    %20 = vector.broadcast %17 : f32 to vector<8x128xf32>
    %21 = arith.addf %20, %19 : vector<8x128xf32>
    %cst_7 = arith.constant 0.000000e+00 : f32
    %22 = vector.broadcast %cst_7 : f32 to vector<8x128xf32>
    %23 = arith.subf %21, %22 : vector<8x128xf32>
    %c0_8 = arith.constant 0 : index
    %c13 = arith.constant 13 : index
    %24 = memref.load %arg1[%c0_8, %c13] : memref<3x16xf32, #tpu.memory_space<smem>>
    %25 = arith.mulf %7, %16 : vector<8x128xf32>
    %26 = vector.broadcast %24 : f32 to vector<8x128xf32>
    %27 = arith.addf %26, %25 : vector<8x128xf32>
    %28 = vector.broadcast %8 : f32 to vector<8x128xf32>
    %29 = arith.subf %27, %28 : vector<8x128xf32>
    %c0_9 = arith.constant 0 : index
    %c13_10 = arith.constant 13 : index
    %30 = memref.load %arg2[%c0_9, %c13_10] : memref<3x16xf32, #tpu.memory_space<smem>>
    %31 = arith.mulf %7, %23 : vector<8x128xf32>
    %32 = vector.broadcast %30 : f32 to vector<8x128xf32>
    %33 = arith.addf %32, %31 : vector<8x128xf32>
    %34 = vector.broadcast %9 : f32 to vector<8x128xf32>
    %35 = arith.subf %33, %34 : vector<8x128xf32>
    %c0_11 = arith.constant 0 : index
    %c12 = arith.constant 12 : index
    %36 = memref.load %arg1[%c0_11, %c12] : memref<3x16xf32, #tpu.memory_space<smem>>
    %37 = arith.mulf %7, %29 : vector<8x128xf32>
    %38 = vector.broadcast %36 : f32 to vector<8x128xf32>
    %39 = arith.addf %38, %37 : vector<8x128xf32>
    %40 = arith.subf %39, %16 : vector<8x128xf32>
    %c0_12 = arith.constant 0 : index
    %c12_13 = arith.constant 12 : index
    %41 = memref.load %arg2[%c0_12, %c12_13] : memref<3x16xf32, #tpu.memory_space<smem>>
    %42 = arith.mulf %7, %35 : vector<8x128xf32>
    %43 = vector.broadcast %41 : f32 to vector<8x128xf32>
    %44 = arith.addf %43, %42 : vector<8x128xf32>
    %45 = arith.subf %44, %23 : vector<8x128xf32>
    %c0_14 = arith.constant 0 : index
    %c11 = arith.constant 11 : index
    %46 = memref.load %arg1[%c0_14, %c11] : memref<3x16xf32, #tpu.memory_space<smem>>
    %47 = arith.mulf %7, %40 : vector<8x128xf32>
    %48 = vector.broadcast %46 : f32 to vector<8x128xf32>
    %49 = arith.addf %48, %47 : vector<8x128xf32>
    %50 = arith.subf %49, %29 : vector<8x128xf32>
    %c0_15 = arith.constant 0 : index
    %c11_16 = arith.constant 11 : index
    %51 = memref.load %arg2[%c0_15, %c11_16] : memref<3x16xf32, #tpu.memory_space<smem>>
    %52 = arith.mulf %7, %45 : vector<8x128xf32>
    %53 = vector.broadcast %51 : f32 to vector<8x128xf32>
    %54 = arith.addf %53, %52 : vector<8x128xf32>
    %55 = arith.subf %54, %35 : vector<8x128xf32>
    %c0_17 = arith.constant 0 : index
    %c10 = arith.constant 10 : index
    %56 = memref.load %arg1[%c0_17, %c10] : memref<3x16xf32, #tpu.memory_space<smem>>
    %57 = arith.mulf %7, %50 : vector<8x128xf32>
    %58 = vector.broadcast %56 : f32 to vector<8x128xf32>
    %59 = arith.addf %58, %57 : vector<8x128xf32>
    %60 = arith.subf %59, %40 : vector<8x128xf32>
    %c0_18 = arith.constant 0 : index
    %c10_19 = arith.constant 10 : index
    %61 = memref.load %arg2[%c0_18, %c10_19] : memref<3x16xf32, #tpu.memory_space<smem>>
    %62 = arith.mulf %7, %55 : vector<8x128xf32>
    %63 = vector.broadcast %61 : f32 to vector<8x128xf32>
    %64 = arith.addf %63, %62 : vector<8x128xf32>
    %65 = arith.subf %64, %45 : vector<8x128xf32>
    %c0_20 = arith.constant 0 : index
    %c9 = arith.constant 9 : index
    %66 = memref.load %arg1[%c0_20, %c9] : memref<3x16xf32, #tpu.memory_space<smem>>
    %67 = arith.mulf %7, %60 : vector<8x128xf32>
    %68 = vector.broadcast %66 : f32 to vector<8x128xf32>
    %69 = arith.addf %68, %67 : vector<8x128xf32>
    %70 = arith.subf %69, %50 : vector<8x128xf32>
    %c0_21 = arith.constant 0 : index
    %c9_22 = arith.constant 9 : index
    %71 = memref.load %arg2[%c0_21, %c9_22] : memref<3x16xf32, #tpu.memory_space<smem>>
    %72 = arith.mulf %7, %65 : vector<8x128xf32>
    %73 = vector.broadcast %71 : f32 to vector<8x128xf32>
    %74 = arith.addf %73, %72 : vector<8x128xf32>
    %75 = arith.subf %74, %55 : vector<8x128xf32>
    %c0_23 = arith.constant 0 : index
    %c8 = arith.constant 8 : index
    %76 = memref.load %arg1[%c0_23, %c8] : memref<3x16xf32, #tpu.memory_space<smem>>
    %77 = arith.mulf %7, %70 : vector<8x128xf32>
    %78 = vector.broadcast %76 : f32 to vector<8x128xf32>
    %79 = arith.addf %78, %77 : vector<8x128xf32>
    %80 = arith.subf %79, %60 : vector<8x128xf32>
    %c0_24 = arith.constant 0 : index
    %c8_25 = arith.constant 8 : index
    %81 = memref.load %arg2[%c0_24, %c8_25] : memref<3x16xf32, #tpu.memory_space<smem>>
    %82 = arith.mulf %7, %75 : vector<8x128xf32>
    %83 = vector.broadcast %81 : f32 to vector<8x128xf32>
    %84 = arith.addf %83, %82 : vector<8x128xf32>
    %85 = arith.subf %84, %65 : vector<8x128xf32>
    %c0_26 = arith.constant 0 : index
    %c7 = arith.constant 7 : index
    %86 = memref.load %arg1[%c0_26, %c7] : memref<3x16xf32, #tpu.memory_space<smem>>
    %87 = arith.mulf %7, %80 : vector<8x128xf32>
    %88 = vector.broadcast %86 : f32 to vector<8x128xf32>
    %89 = arith.addf %88, %87 : vector<8x128xf32>
    %90 = arith.subf %89, %70 : vector<8x128xf32>
    %c0_27 = arith.constant 0 : index
    %c7_28 = arith.constant 7 : index
    %91 = memref.load %arg2[%c0_27, %c7_28] : memref<3x16xf32, #tpu.memory_space<smem>>
    %92 = arith.mulf %7, %85 : vector<8x128xf32>
    %93 = vector.broadcast %91 : f32 to vector<8x128xf32>
    %94 = arith.addf %93, %92 : vector<8x128xf32>
    %95 = arith.subf %94, %75 : vector<8x128xf32>
    %c0_29 = arith.constant 0 : index
    %c6 = arith.constant 6 : index
    %96 = memref.load %arg1[%c0_29, %c6] : memref<3x16xf32, #tpu.memory_space<smem>>
    %97 = arith.mulf %7, %90 : vector<8x128xf32>
    %98 = vector.broadcast %96 : f32 to vector<8x128xf32>
    %99 = arith.addf %98, %97 : vector<8x128xf32>
    %100 = arith.subf %99, %80 : vector<8x128xf32>
    %c0_30 = arith.constant 0 : index
    %c6_31 = arith.constant 6 : index
    %101 = memref.load %arg2[%c0_30, %c6_31] : memref<3x16xf32, #tpu.memory_space<smem>>
    %102 = arith.mulf %7, %95 : vector<8x128xf32>
    %103 = vector.broadcast %101 : f32 to vector<8x128xf32>
    %104 = arith.addf %103, %102 : vector<8x128xf32>
    %105 = arith.subf %104, %85 : vector<8x128xf32>
    %c0_32 = arith.constant 0 : index
    %c5 = arith.constant 5 : index
    %106 = memref.load %arg1[%c0_32, %c5] : memref<3x16xf32, #tpu.memory_space<smem>>
    %107 = arith.mulf %7, %100 : vector<8x128xf32>
    %108 = vector.broadcast %106 : f32 to vector<8x128xf32>
    %109 = arith.addf %108, %107 : vector<8x128xf32>
    %110 = arith.subf %109, %90 : vector<8x128xf32>
    %c0_33 = arith.constant 0 : index
    %c5_34 = arith.constant 5 : index
    %111 = memref.load %arg2[%c0_33, %c5_34] : memref<3x16xf32, #tpu.memory_space<smem>>
    %112 = arith.mulf %7, %105 : vector<8x128xf32>
    %113 = vector.broadcast %111 : f32 to vector<8x128xf32>
    %114 = arith.addf %113, %112 : vector<8x128xf32>
    %115 = arith.subf %114, %95 : vector<8x128xf32>
    %c0_35 = arith.constant 0 : index
    %c4 = arith.constant 4 : index
    %116 = memref.load %arg1[%c0_35, %c4] : memref<3x16xf32, #tpu.memory_space<smem>>
    %117 = arith.mulf %7, %110 : vector<8x128xf32>
    %118 = vector.broadcast %116 : f32 to vector<8x128xf32>
    %119 = arith.addf %118, %117 : vector<8x128xf32>
    %120 = arith.subf %119, %100 : vector<8x128xf32>
    %c0_36 = arith.constant 0 : index
    %c4_37 = arith.constant 4 : index
    %121 = memref.load %arg2[%c0_36, %c4_37] : memref<3x16xf32, #tpu.memory_space<smem>>
    %122 = arith.mulf %7, %115 : vector<8x128xf32>
    %123 = vector.broadcast %121 : f32 to vector<8x128xf32>
    %124 = arith.addf %123, %122 : vector<8x128xf32>
    %125 = arith.subf %124, %105 : vector<8x128xf32>
    %c0_38 = arith.constant 0 : index
    %c3 = arith.constant 3 : index
    %126 = memref.load %arg1[%c0_38, %c3] : memref<3x16xf32, #tpu.memory_space<smem>>
    %127 = arith.mulf %7, %120 : vector<8x128xf32>
    %128 = vector.broadcast %126 : f32 to vector<8x128xf32>
    %129 = arith.addf %128, %127 : vector<8x128xf32>
    %130 = arith.subf %129, %110 : vector<8x128xf32>
    %c0_39 = arith.constant 0 : index
    %c3_40 = arith.constant 3 : index
    %131 = memref.load %arg2[%c0_39, %c3_40] : memref<3x16xf32, #tpu.memory_space<smem>>
    %132 = arith.mulf %7, %125 : vector<8x128xf32>
    %133 = vector.broadcast %131 : f32 to vector<8x128xf32>
    %134 = arith.addf %133, %132 : vector<8x128xf32>
    %135 = arith.subf %134, %115 : vector<8x128xf32>
    %c0_41 = arith.constant 0 : index
    %c2 = arith.constant 2 : index
    %136 = memref.load %arg1[%c0_41, %c2] : memref<3x16xf32, #tpu.memory_space<smem>>
    %137 = arith.mulf %7, %130 : vector<8x128xf32>
    %138 = vector.broadcast %136 : f32 to vector<8x128xf32>
    %139 = arith.addf %138, %137 : vector<8x128xf32>
    %140 = arith.subf %139, %120 : vector<8x128xf32>
    %c0_42 = arith.constant 0 : index
    %c2_43 = arith.constant 2 : index
    %141 = memref.load %arg2[%c0_42, %c2_43] : memref<3x16xf32, #tpu.memory_space<smem>>
    %142 = arith.mulf %7, %135 : vector<8x128xf32>
    %143 = vector.broadcast %141 : f32 to vector<8x128xf32>
    %144 = arith.addf %143, %142 : vector<8x128xf32>
    %145 = arith.subf %144, %125 : vector<8x128xf32>
    %c0_44 = arith.constant 0 : index
    %c1 = arith.constant 1 : index
    %146 = memref.load %arg1[%c0_44, %c1] : memref<3x16xf32, #tpu.memory_space<smem>>
    %147 = arith.mulf %7, %140 : vector<8x128xf32>
    %148 = vector.broadcast %146 : f32 to vector<8x128xf32>
    %149 = arith.addf %148, %147 : vector<8x128xf32>
    %150 = arith.subf %149, %130 : vector<8x128xf32>
    %c0_45 = arith.constant 0 : index
    %c1_46 = arith.constant 1 : index
    %151 = memref.load %arg2[%c0_45, %c1_46] : memref<3x16xf32, #tpu.memory_space<smem>>
    %152 = arith.mulf %7, %145 : vector<8x128xf32>
    %153 = vector.broadcast %151 : f32 to vector<8x128xf32>
    %154 = arith.addf %153, %152 : vector<8x128xf32>
    %155 = arith.subf %154, %135 : vector<8x128xf32>
    %c0_47 = arith.constant 0 : index
    %c0_48 = arith.constant 0 : index
    %156 = memref.load %arg1[%c0_47, %c0_48] : memref<3x16xf32, #tpu.memory_space<smem>>
    %157 = arith.mulf %7, %150 : vector<8x128xf32>
    %158 = vector.broadcast %156 : f32 to vector<8x128xf32>
    %159 = arith.addf %158, %157 : vector<8x128xf32>
    %160 = arith.subf %159, %140 : vector<8x128xf32>
    %c0_49 = arith.constant 0 : index
    %c0_50 = arith.constant 0 : index
    %161 = memref.load %arg2[%c0_49, %c0_50] : memref<3x16xf32, #tpu.memory_space<smem>>
    %162 = arith.mulf %7, %155 : vector<8x128xf32>
    %163 = vector.broadcast %161 : f32 to vector<8x128xf32>
    %164 = arith.addf %163, %162 : vector<8x128xf32>
    %165 = arith.subf %164, %145 : vector<8x128xf32>
    %c0_51 = arith.constant 0 : index
    %166 = memref.load %arg3[%c0_51] : memref<3xf32, #tpu.memory_space<smem>>
    %167 = arith.mulf %4, %160 : vector<8x128xf32>
    %168 = vector.broadcast %166 : f32 to vector<8x128xf32>
    %169 = arith.addf %168, %167 : vector<8x128xf32>
    %170 = arith.mulf %5, %165 : vector<8x128xf32>
    %171 = arith.subf %170, %155 : vector<8x128xf32>
    %172 = arith.addf %169, %171 : vector<8x128xf32>
    %c0_52 = arith.constant 0 : index
    %173 = arith.index_cast %1 : i32 to index
    %c0_53 = arith.constant 0 : index
    %174 = vector.load %arg5[%c0_52, %173, %c0_53] : memref<3x8x128xf32, #tpu.memory_space<vmem>>, vector<1x8x128xf32>
    %175 = vector.shape_cast %174 : vector<1x8x128xf32> to vector<8x128xf32>
    %176 = vector.shape_cast %172 : vector<8x128xf32> to vector<1x8x128xf32>
    tpu.vector_store %arg5[%c0_52, %173, %c0_53], %176 {strides = array<i32>} : memref<3x8x128xf32, #tpu.memory_space<vmem>>, vector<1x8x128xf32>,
    %177 = arith.mulf %3, %3 : vector<8x128xf32>
    %178 = math.sin %177 : vector<8x128xf32>
    %179 = math.cos %177 : vector<8x128xf32>
    %cst_54 = arith.constant 2.000000e+00 : f32
    %180 = vector.broadcast %cst_54 : f32 to vector<8x128xf32>
    %181 = arith.mulf %180, %179 : vector<8x128xf32>
    %c1_55 = arith.constant 1 : index
    %c15_56 = arith.constant 15 : index
    %182 = memref.load %arg1[%c1_55, %c15_56] : memref<3x16xf32, #tpu.memory_space<smem>>
    %c1_57 = arith.constant 1 : index
    %c15_58 = arith.constant 15 : index
    %183 = memref.load %arg2[%c1_57, %c15_58] : memref<3x16xf32, #tpu.memory_space<smem>>
    %c1_59 = arith.constant 1 : index
    %c14_60 = arith.constant 14 : index
    %184 = memref.load %arg1[%c1_59, %c14_60] : memref<3x16xf32, #tpu.memory_space<smem>>
    %185 = vector.broadcast %182 : f32 to vector<8x128xf32>
    %186 = arith.mulf %181, %185 : vector<8x128xf32>
    %187 = vector.broadcast %184 : f32 to vector<8x128xf32>
    %188 = arith.addf %187, %186 : vector<8x128xf32>
    %cst_61 = arith.constant 0.000000e+00 : f32
    %189 = vector.broadcast %cst_61 : f32 to vector<8x128xf32>
    %190 = arith.subf %188, %189 : vector<8x128xf32>
    %c1_62 = arith.constant 1 : index
    %c14_63 = arith.constant 14 : index
    %191 = memref.load %arg2[%c1_62, %c14_63] : memref<3x16xf32, #tpu.memory_space<smem>>
    %192 = vector.broadcast %183 : f32 to vector<8x128xf32>
    %193 = arith.mulf %181, %192 : vector<8x128xf32>
    %194 = vector.broadcast %191 : f32 to vector<8x128xf32>
    %195 = arith.addf %194, %193 : vector<8x128xf32>
    %cst_64 = arith.constant 0.000000e+00 : f32
    %196 = vector.broadcast %cst_64 : f32 to vector<8x128xf32>
    %197 = arith.subf %195, %196 : vector<8x128xf32>
    %c1_65 = arith.constant 1 : index
    %c13_66 = arith.constant 13 : index
    %198 = memref.load %arg1[%c1_65, %c13_66] : memref<3x16xf32, #tpu.memory_space<smem>>
    %199 = arith.mulf %181, %190 : vector<8x128xf32>
    %200 = vector.broadcast %198 : f32 to vector<8x128xf32>
    %201 = arith.addf %200, %199 : vector<8x128xf32>
    %202 = vector.broadcast %182 : f32 to vector<8x128xf32>
    %203 = arith.subf %201, %202 : vector<8x128xf32>
    %c1_67 = arith.constant 1 : index
    %c13_68 = arith.constant 13 : index
    %204 = memref.load %arg2[%c1_67, %c13_68] : memref<3x16xf32, #tpu.memory_space<smem>>
    %205 = arith.mulf %181, %197 : vector<8x128xf32>
    %206 = vector.broadcast %204 : f32 to vector<8x128xf32>
    %207 = arith.addf %206, %205 : vector<8x128xf32>
    %208 = vector.broadcast %183 : f32 to vector<8x128xf32>
    %209 = arith.subf %207, %208 : vector<8x128xf32>
    %c1_69 = arith.constant 1 : index
    %c12_70 = arith.constant 12 : index
    %210 = memref.load %arg1[%c1_69, %c12_70] : memref<3x16xf32, #tpu.memory_space<smem>>
    %211 = arith.mulf %181, %203 : vector<8x128xf32>
    %212 = vector.broadcast %210 : f32 to vector<8x128xf32>
    %213 = arith.addf %212, %211 : vector<8x128xf32>
    %214 = arith.subf %213, %190 : vector<8x128xf32>
    %c1_71 = arith.constant 1 : index
    %c12_72 = arith.constant 12 : index
    %215 = memref.load %arg2[%c1_71, %c12_72] : memref<3x16xf32, #tpu.memory_space<smem>>
    %216 = arith.mulf %181, %209 : vector<8x128xf32>
    %217 = vector.broadcast %215 : f32 to vector<8x128xf32>
    %218 = arith.addf %217, %216 : vector<8x128xf32>
    %219 = arith.subf %218, %197 : vector<8x128xf32>
    %c1_73 = arith.constant 1 : index
    %c11_74 = arith.constant 11 : index
    %220 = memref.load %arg1[%c1_73, %c11_74] : memref<3x16xf32, #tpu.memory_space<smem>>
    %221 = arith.mulf %181, %214 : vector<8x128xf32>
    %222 = vector.broadcast %220 : f32 to vector<8x128xf32>
    %223 = arith.addf %222, %221 : vector<8x128xf32>
    %224 = arith.subf %223, %203 : vector<8x128xf32>
    %c1_75 = arith.constant 1 : index
    %c11_76 = arith.constant 11 : index
    %225 = memref.load %arg2[%c1_75, %c11_76] : memref<3x16xf32, #tpu.memory_space<smem>>
    %226 = arith.mulf %181, %219 : vector<8x128xf32>
    %227 = vector.broadcast %225 : f32 to vector<8x128xf32>
    %228 = arith.addf %227, %226 : vector<8x128xf32>
    %229 = arith.subf %228, %209 : vector<8x128xf32>
    %c1_77 = arith.constant 1 : index
    %c10_78 = arith.constant 10 : index
    %230 = memref.load %arg1[%c1_77, %c10_78] : memref<3x16xf32, #tpu.memory_space<smem>>
    %231 = arith.mulf %181, %224 : vector<8x128xf32>
    %232 = vector.broadcast %230 : f32 to vector<8x128xf32>
    %233 = arith.addf %232, %231 : vector<8x128xf32>
    %234 = arith.subf %233, %214 : vector<8x128xf32>
    %c1_79 = arith.constant 1 : index
    %c10_80 = arith.constant 10 : index
    %235 = memref.load %arg2[%c1_79, %c10_80] : memref<3x16xf32, #tpu.memory_space<smem>>
    %236 = arith.mulf %181, %229 : vector<8x128xf32>
    %237 = vector.broadcast %235 : f32 to vector<8x128xf32>
    %238 = arith.addf %237, %236 : vector<8x128xf32>
    %239 = arith.subf %238, %219 : vector<8x128xf32>
    %c1_81 = arith.constant 1 : index
    %c9_82 = arith.constant 9 : index
    %240 = memref.load %arg1[%c1_81, %c9_82] : memref<3x16xf32, #tpu.memory_space<smem>>
    %241 = arith.mulf %181, %234 : vector<8x128xf32>
    %242 = vector.broadcast %240 : f32 to vector<8x128xf32>
    %243 = arith.addf %242, %241 : vector<8x128xf32>
    %244 = arith.subf %243, %224 : vector<8x128xf32>
    %c1_83 = arith.constant 1 : index
    %c9_84 = arith.constant 9 : index
    %245 = memref.load %arg2[%c1_83, %c9_84] : memref<3x16xf32, #tpu.memory_space<smem>>
    %246 = arith.mulf %181, %239 : vector<8x128xf32>
    %247 = vector.broadcast %245 : f32 to vector<8x128xf32>
    %248 = arith.addf %247, %246 : vector<8x128xf32>
    %249 = arith.subf %248, %229 : vector<8x128xf32>
    %c1_85 = arith.constant 1 : index
    %c8_86 = arith.constant 8 : index
    %250 = memref.load %arg1[%c1_85, %c8_86] : memref<3x16xf32, #tpu.memory_space<smem>>
    %251 = arith.mulf %181, %244 : vector<8x128xf32>
    %252 = vector.broadcast %250 : f32 to vector<8x128xf32>
    %253 = arith.addf %252, %251 : vector<8x128xf32>
    %254 = arith.subf %253, %234 : vector<8x128xf32>
    %c1_87 = arith.constant 1 : index
    %c8_88 = arith.constant 8 : index
    %255 = memref.load %arg2[%c1_87, %c8_88] : memref<3x16xf32, #tpu.memory_space<smem>>
    %256 = arith.mulf %181, %249 : vector<8x128xf32>
    %257 = vector.broadcast %255 : f32 to vector<8x128xf32>
    %258 = arith.addf %257, %256 : vector<8x128xf32>
    %259 = arith.subf %258, %239 : vector<8x128xf32>
    %c1_89 = arith.constant 1 : index
    %c7_90 = arith.constant 7 : index
    %260 = memref.load %arg1[%c1_89, %c7_90] : memref<3x16xf32, #tpu.memory_space<smem>>
    %261 = arith.mulf %181, %254 : vector<8x128xf32>
    %262 = vector.broadcast %260 : f32 to vector<8x128xf32>
    %263 = arith.addf %262, %261 : vector<8x128xf32>
    %264 = arith.subf %263, %244 : vector<8x128xf32>
    %c1_91 = arith.constant 1 : index
    %c7_92 = arith.constant 7 : index
    %265 = memref.load %arg2[%c1_91, %c7_92] : memref<3x16xf32, #tpu.memory_space<smem>>
    %266 = arith.mulf %181, %259 : vector<8x128xf32>
    %267 = vector.broadcast %265 : f32 to vector<8x128xf32>
    %268 = arith.addf %267, %266 : vector<8x128xf32>
    %269 = arith.subf %268, %249 : vector<8x128xf32>
    %c1_93 = arith.constant 1 : index
    %c6_94 = arith.constant 6 : index
    %270 = memref.load %arg1[%c1_93, %c6_94] : memref<3x16xf32, #tpu.memory_space<smem>>
    %271 = arith.mulf %181, %264 : vector<8x128xf32>
    %272 = vector.broadcast %270 : f32 to vector<8x128xf32>
    %273 = arith.addf %272, %271 : vector<8x128xf32>
    %274 = arith.subf %273, %254 : vector<8x128xf32>
    %c1_95 = arith.constant 1 : index
    %c6_96 = arith.constant 6 : index
    %275 = memref.load %arg2[%c1_95, %c6_96] : memref<3x16xf32, #tpu.memory_space<smem>>
    %276 = arith.mulf %181, %269 : vector<8x128xf32>
    %277 = vector.broadcast %275 : f32 to vector<8x128xf32>
    %278 = arith.addf %277, %276 : vector<8x128xf32>
    %279 = arith.subf %278, %259 : vector<8x128xf32>
    %c1_97 = arith.constant 1 : index
    %c5_98 = arith.constant 5 : index
    %280 = memref.load %arg1[%c1_97, %c5_98] : memref<3x16xf32, #tpu.memory_space<smem>>
    %281 = arith.mulf %181, %274 : vector<8x128xf32>
    %282 = vector.broadcast %280 : f32 to vector<8x128xf32>
    %283 = arith.addf %282, %281 : vector<8x128xf32>
    %284 = arith.subf %283, %264 : vector<8x128xf32>
    %c1_99 = arith.constant 1 : index
    %c5_100 = arith.constant 5 : index
    %285 = memref.load %arg2[%c1_99, %c5_100] : memref<3x16xf32, #tpu.memory_space<smem>>
    %286 = arith.mulf %181, %279 : vector<8x128xf32>
    %287 = vector.broadcast %285 : f32 to vector<8x128xf32>
    %288 = arith.addf %287, %286 : vector<8x128xf32>
    %289 = arith.subf %288, %269 : vector<8x128xf32>
    %c1_101 = arith.constant 1 : index
    %c4_102 = arith.constant 4 : index
    %290 = memref.load %arg1[%c1_101, %c4_102] : memref<3x16xf32, #tpu.memory_space<smem>>
    %291 = arith.mulf %181, %284 : vector<8x128xf32>
    %292 = vector.broadcast %290 : f32 to vector<8x128xf32>
    %293 = arith.addf %292, %291 : vector<8x128xf32>
    %294 = arith.subf %293, %274 : vector<8x128xf32>
    %c1_103 = arith.constant 1 : index
    %c4_104 = arith.constant 4 : index
    %295 = memref.load %arg2[%c1_103, %c4_104] : memref<3x16xf32, #tpu.memory_space<smem>>
    %296 = arith.mulf %181, %289 : vector<8x128xf32>
    %297 = vector.broadcast %295 : f32 to vector<8x128xf32>
    %298 = arith.addf %297, %296 : vector<8x128xf32>
    %299 = arith.subf %298, %279 : vector<8x128xf32>
    %c1_105 = arith.constant 1 : index
    %c3_106 = arith.constant 3 : index
    %300 = memref.load %arg1[%c1_105, %c3_106] : memref<3x16xf32, #tpu.memory_space<smem>>
    %301 = arith.mulf %181, %294 : vector<8x128xf32>
    %302 = vector.broadcast %300 : f32 to vector<8x128xf32>
    %303 = arith.addf %302, %301 : vector<8x128xf32>
    %304 = arith.subf %303, %284 : vector<8x128xf32>
    %c1_107 = arith.constant 1 : index
    %c3_108 = arith.constant 3 : index
    %305 = memref.load %arg2[%c1_107, %c3_108] : memref<3x16xf32, #tpu.memory_space<smem>>
    %306 = arith.mulf %181, %299 : vector<8x128xf32>
    %307 = vector.broadcast %305 : f32 to vector<8x128xf32>
    %308 = arith.addf %307, %306 : vector<8x128xf32>
    %309 = arith.subf %308, %289 : vector<8x128xf32>
    %c1_109 = arith.constant 1 : index
    %c2_110 = arith.constant 2 : index
    %310 = memref.load %arg1[%c1_109, %c2_110] : memref<3x16xf32, #tpu.memory_space<smem>>
    %311 = arith.mulf %181, %304 : vector<8x128xf32>
    %312 = vector.broadcast %310 : f32 to vector<8x128xf32>
    %313 = arith.addf %312, %311 : vector<8x128xf32>
    %314 = arith.subf %313, %294 : vector<8x128xf32>
    %c1_111 = arith.constant 1 : index
    %c2_112 = arith.constant 2 : index
    %315 = memref.load %arg2[%c1_111, %c2_112] : memref<3x16xf32, #tpu.memory_space<smem>>
    %316 = arith.mulf %181, %309 : vector<8x128xf32>
    %317 = vector.broadcast %315 : f32 to vector<8x128xf32>
    %318 = arith.addf %317, %316 : vector<8x128xf32>
    %319 = arith.subf %318, %299 : vector<8x128xf32>
    %c1_113 = arith.constant 1 : index
    %c1_114 = arith.constant 1 : index
    %320 = memref.load %arg1[%c1_113, %c1_114] : memref<3x16xf32, #tpu.memory_space<smem>>
    %321 = arith.mulf %181, %314 : vector<8x128xf32>
    %322 = vector.broadcast %320 : f32 to vector<8x128xf32>
    %323 = arith.addf %322, %321 : vector<8x128xf32>
    %324 = arith.subf %323, %304 : vector<8x128xf32>
    %c1_115 = arith.constant 1 : index
    %c1_116 = arith.constant 1 : index
    %325 = memref.load %arg2[%c1_115, %c1_116] : memref<3x16xf32, #tpu.memory_space<smem>>
    %326 = arith.mulf %181, %319 : vector<8x128xf32>
    %327 = vector.broadcast %325 : f32 to vector<8x128xf32>
    %328 = arith.addf %327, %326 : vector<8x128xf32>
    %329 = arith.subf %328, %309 : vector<8x128xf32>
    %c1_117 = arith.constant 1 : index
    %c0_118 = arith.constant 0 : index
    %330 = memref.load %arg1[%c1_117, %c0_118] : memref<3x16xf32, #tpu.memory_space<smem>>
    %331 = arith.mulf %181, %324 : vector<8x128xf32>
    %332 = vector.broadcast %330 : f32 to vector<8x128xf32>
    %333 = arith.addf %332, %331 : vector<8x128xf32>
    %334 = arith.subf %333, %314 : vector<8x128xf32>
    %c1_119 = arith.constant 1 : index
    %c0_120 = arith.constant 0 : index
    %335 = memref.load %arg2[%c1_119, %c0_120] : memref<3x16xf32, #tpu.memory_space<smem>>
    %336 = arith.mulf %181, %329 : vector<8x128xf32>
    %337 = vector.broadcast %335 : f32 to vector<8x128xf32>
    %338 = arith.addf %337, %336 : vector<8x128xf32>
    %339 = arith.subf %338, %319 : vector<8x128xf32>
    %c1_121 = arith.constant 1 : index
    %340 = memref.load %arg3[%c1_121] : memref<3xf32, #tpu.memory_space<smem>>
    %341 = arith.mulf %178, %334 : vector<8x128xf32>
    %342 = vector.broadcast %340 : f32 to vector<8x128xf32>
    %343 = arith.addf %342, %341 : vector<8x128xf32>
    %344 = arith.mulf %179, %339 : vector<8x128xf32>
    %345 = arith.subf %344, %329 : vector<8x128xf32>
    %346 = arith.addf %343, %345 : vector<8x128xf32>
    %c1_122 = arith.constant 1 : index
    %347 = arith.index_cast %1 : i32 to index
    %c0_123 = arith.constant 0 : index
    %348 = vector.load %arg5[%c1_122, %347, %c0_123] : memref<3x8x128xf32, #tpu.memory_space<vmem>>, vector<1x8x128xf32>
    %349 = vector.shape_cast %348 : vector<1x8x128xf32> to vector<8x128xf32>
    %350 = vector.shape_cast %346 : vector<8x128xf32> to vector<1x8x128xf32>
    tpu.vector_store %arg5[%c1_122, %347, %c0_123], %350 {strides = array<i32>} : memref<3x8x128xf32, #tpu.memory_space<vmem>>, vector<1x8x128xf32>,
    %351 = arith.mulf %177, %3 : vector<8x128xf32>
    %352 = math.sin %351 : vector<8x128xf32>
    %353 = math.cos %351 : vector<8x128xf32>
    %cst_124 = arith.constant 2.000000e+00 : f32
    %354 = vector.broadcast %cst_124 : f32 to vector<8x128xf32>
    %355 = arith.mulf %354, %353 : vector<8x128xf32>
    %c2_125 = arith.constant 2 : index
    %c15_126 = arith.constant 15 : index
    %356 = memref.load %arg1[%c2_125, %c15_126] : memref<3x16xf32, #tpu.memory_space<smem>>
    %c2_127 = arith.constant 2 : index
    %c15_128 = arith.constant 15 : index
    %357 = memref.load %arg2[%c2_127, %c15_128] : memref<3x16xf32, #tpu.memory_space<smem>>
    %c2_129 = arith.constant 2 : index
    %c14_130 = arith.constant 14 : index
    %358 = memref.load %arg1[%c2_129, %c14_130] : memref<3x16xf32, #tpu.memory_space<smem>>
    %359 = vector.broadcast %356 : f32 to vector<8x128xf32>
    %360 = arith.mulf %355, %359 : vector<8x128xf32>
    %361 = vector.broadcast %358 : f32 to vector<8x128xf32>
    %362 = arith.addf %361, %360 : vector<8x128xf32>
    %cst_131 = arith.constant 0.000000e+00 : f32
    %363 = vector.broadcast %cst_131 : f32 to vector<8x128xf32>
    %364 = arith.subf %362, %363 : vector<8x128xf32>
    %c2_132 = arith.constant 2 : index
    %c14_133 = arith.constant 14 : index
    %365 = memref.load %arg2[%c2_132, %c14_133] : memref<3x16xf32, #tpu.memory_space<smem>>
    %366 = vector.broadcast %357 : f32 to vector<8x128xf32>
    %367 = arith.mulf %355, %366 : vector<8x128xf32>
    %368 = vector.broadcast %365 : f32 to vector<8x128xf32>
    %369 = arith.addf %368, %367 : vector<8x128xf32>
    %cst_134 = arith.constant 0.000000e+00 : f32
    %370 = vector.broadcast %cst_134 : f32 to vector<8x128xf32>
    %371 = arith.subf %369, %370 : vector<8x128xf32>
    %c2_135 = arith.constant 2 : index
    %c13_136 = arith.constant 13 : index
    %372 = memref.load %arg1[%c2_135, %c13_136] : memref<3x16xf32, #tpu.memory_space<smem>>
    %373 = arith.mulf %355, %364 : vector<8x128xf32>
    %374 = vector.broadcast %372 : f32 to vector<8x128xf32>
    %375 = arith.addf %374, %373 : vector<8x128xf32>
    %376 = vector.broadcast %356 : f32 to vector<8x128xf32>
    %377 = arith.subf %375, %376 : vector<8x128xf32>
    %c2_137 = arith.constant 2 : index
    %c13_138 = arith.constant 13 : index
    %378 = memref.load %arg2[%c2_137, %c13_138] : memref<3x16xf32, #tpu.memory_space<smem>>
    %379 = arith.mulf %355, %371 : vector<8x128xf32>
    %380 = vector.broadcast %378 : f32 to vector<8x128xf32>
    %381 = arith.addf %380, %379 : vector<8x128xf32>
    %382 = vector.broadcast %357 : f32 to vector<8x128xf32>
    %383 = arith.subf %381, %382 : vector<8x128xf32>
    %c2_139 = arith.constant 2 : index
    %c12_140 = arith.constant 12 : index
    %384 = memref.load %arg1[%c2_139, %c12_140] : memref<3x16xf32, #tpu.memory_space<smem>>
    %385 = arith.mulf %355, %377 : vector<8x128xf32>
    %386 = vector.broadcast %384 : f32 to vector<8x128xf32>
    %387 = arith.addf %386, %385 : vector<8x128xf32>
    %388 = arith.subf %387, %364 : vector<8x128xf32>
    %c2_141 = arith.constant 2 : index
    %c12_142 = arith.constant 12 : index
    %389 = memref.load %arg2[%c2_141, %c12_142] : memref<3x16xf32, #tpu.memory_space<smem>>
    %390 = arith.mulf %355, %383 : vector<8x128xf32>
    %391 = vector.broadcast %389 : f32 to vector<8x128xf32>
    %392 = arith.addf %391, %390 : vector<8x128xf32>
    %393 = arith.subf %392, %371 : vector<8x128xf32>
    %c2_143 = arith.constant 2 : index
    %c11_144 = arith.constant 11 : index
    %394 = memref.load %arg1[%c2_143, %c11_144] : memref<3x16xf32, #tpu.memory_space<smem>>
    %395 = arith.mulf %355, %388 : vector<8x128xf32>
    %396 = vector.broadcast %394 : f32 to vector<8x128xf32>
    %397 = arith.addf %396, %395 : vector<8x128xf32>
    %398 = arith.subf %397, %377 : vector<8x128xf32>
    %c2_145 = arith.constant 2 : index
    %c11_146 = arith.constant 11 : index
    %399 = memref.load %arg2[%c2_145, %c11_146] : memref<3x16xf32, #tpu.memory_space<smem>>
    %400 = arith.mulf %355, %393 : vector<8x128xf32>
    %401 = vector.broadcast %399 : f32 to vector<8x128xf32>
    %402 = arith.addf %401, %400 : vector<8x128xf32>
    %403 = arith.subf %402, %383 : vector<8x128xf32>
    %c2_147 = arith.constant 2 : index
    %c10_148 = arith.constant 10 : index
    %404 = memref.load %arg1[%c2_147, %c10_148] : memref<3x16xf32, #tpu.memory_space<smem>>
    %405 = arith.mulf %355, %398 : vector<8x128xf32>
    %406 = vector.broadcast %404 : f32 to vector<8x128xf32>
    %407 = arith.addf %406, %405 : vector<8x128xf32>
    %408 = arith.subf %407, %388 : vector<8x128xf32>
    %c2_149 = arith.constant 2 : index
    %c10_150 = arith.constant 10 : index
    %409 = memref.load %arg2[%c2_149, %c10_150] : memref<3x16xf32, #tpu.memory_space<smem>>
    %410 = arith.mulf %355, %403 : vector<8x128xf32>
    %411 = vector.broadcast %409 : f32 to vector<8x128xf32>
    %412 = arith.addf %411, %410 : vector<8x128xf32>
    %413 = arith.subf %412, %393 : vector<8x128xf32>
    %c2_151 = arith.constant 2 : index
    %c9_152 = arith.constant 9 : index
    %414 = memref.load %arg1[%c2_151, %c9_152] : memref<3x16xf32, #tpu.memory_space<smem>>
    %415 = arith.mulf %355, %408 : vector<8x128xf32>
    %416 = vector.broadcast %414 : f32 to vector<8x128xf32>
    %417 = arith.addf %416, %415 : vector<8x128xf32>
    %418 = arith.subf %417, %398 : vector<8x128xf32>
    %c2_153 = arith.constant 2 : index
    %c9_154 = arith.constant 9 : index
    %419 = memref.load %arg2[%c2_153, %c9_154] : memref<3x16xf32, #tpu.memory_space<smem>>
    %420 = arith.mulf %355, %413 : vector<8x128xf32>
    %421 = vector.broadcast %419 : f32 to vector<8x128xf32>
    %422 = arith.addf %421, %420 : vector<8x128xf32>
    %423 = arith.subf %422, %403 : vector<8x128xf32>
    %c2_155 = arith.constant 2 : index
    %c8_156 = arith.constant 8 : index
    %424 = memref.load %arg1[%c2_155, %c8_156] : memref<3x16xf32, #tpu.memory_space<smem>>
    %425 = arith.mulf %355, %418 : vector<8x128xf32>
    %426 = vector.broadcast %424 : f32 to vector<8x128xf32>
    %427 = arith.addf %426, %425 : vector<8x128xf32>
    %428 = arith.subf %427, %408 : vector<8x128xf32>
    %c2_157 = arith.constant 2 : index
    %c8_158 = arith.constant 8 : index
    %429 = memref.load %arg2[%c2_157, %c8_158] : memref<3x16xf32, #tpu.memory_space<smem>>
    %430 = arith.mulf %355, %423 : vector<8x128xf32>
    %431 = vector.broadcast %429 : f32 to vector<8x128xf32>
    %432 = arith.addf %431, %430 : vector<8x128xf32>
    %433 = arith.subf %432, %413 : vector<8x128xf32>
    %c2_159 = arith.constant 2 : index
    %c7_160 = arith.constant 7 : index
    %434 = memref.load %arg1[%c2_159, %c7_160] : memref<3x16xf32, #tpu.memory_space<smem>>
    %435 = arith.mulf %355, %428 : vector<8x128xf32>
    %436 = vector.broadcast %434 : f32 to vector<8x128xf32>
    %437 = arith.addf %436, %435 : vector<8x128xf32>
    %438 = arith.subf %437, %418 : vector<8x128xf32>
    %c2_161 = arith.constant 2 : index
    %c7_162 = arith.constant 7 : index
    %439 = memref.load %arg2[%c2_161, %c7_162] : memref<3x16xf32, #tpu.memory_space<smem>>
    %440 = arith.mulf %355, %433 : vector<8x128xf32>
    %441 = vector.broadcast %439 : f32 to vector<8x128xf32>
    %442 = arith.addf %441, %440 : vector<8x128xf32>
    %443 = arith.subf %442, %423 : vector<8x128xf32>
    %c2_163 = arith.constant 2 : index
    %c6_164 = arith.constant 6 : index
    %444 = memref.load %arg1[%c2_163, %c6_164] : memref<3x16xf32, #tpu.memory_space<smem>>
    %445 = arith.mulf %355, %438 : vector<8x128xf32>
    %446 = vector.broadcast %444 : f32 to vector<8x128xf32>
    %447 = arith.addf %446, %445 : vector<8x128xf32>
    %448 = arith.subf %447, %428 : vector<8x128xf32>
    %c2_165 = arith.constant 2 : index
    %c6_166 = arith.constant 6 : index
    %449 = memref.load %arg2[%c2_165, %c6_166] : memref<3x16xf32, #tpu.memory_space<smem>>
    %450 = arith.mulf %355, %443 : vector<8x128xf32>
    %451 = vector.broadcast %449 : f32 to vector<8x128xf32>
    %452 = arith.addf %451, %450 : vector<8x128xf32>
    %453 = arith.subf %452, %433 : vector<8x128xf32>
    %c2_167 = arith.constant 2 : index
    %c5_168 = arith.constant 5 : index
    %454 = memref.load %arg1[%c2_167, %c5_168] : memref<3x16xf32, #tpu.memory_space<smem>>
    %455 = arith.mulf %355, %448 : vector<8x128xf32>
    %456 = vector.broadcast %454 : f32 to vector<8x128xf32>
    %457 = arith.addf %456, %455 : vector<8x128xf32>
    %458 = arith.subf %457, %438 : vector<8x128xf32>
    %c2_169 = arith.constant 2 : index
    %c5_170 = arith.constant 5 : index
    %459 = memref.load %arg2[%c2_169, %c5_170] : memref<3x16xf32, #tpu.memory_space<smem>>
    %460 = arith.mulf %355, %453 : vector<8x128xf32>
    %461 = vector.broadcast %459 : f32 to vector<8x128xf32>
    %462 = arith.addf %461, %460 : vector<8x128xf32>
    %463 = arith.subf %462, %443 : vector<8x128xf32>
    %c2_171 = arith.constant 2 : index
    %c4_172 = arith.constant 4 : index
    %464 = memref.load %arg1[%c2_171, %c4_172] : memref<3x16xf32, #tpu.memory_space<smem>>
    %465 = arith.mulf %355, %458 : vector<8x128xf32>
    %466 = vector.broadcast %464 : f32 to vector<8x128xf32>
    %467 = arith.addf %466, %465 : vector<8x128xf32>
    %468 = arith.subf %467, %448 : vector<8x128xf32>
    %c2_173 = arith.constant 2 : index
    %c4_174 = arith.constant 4 : index
    %469 = memref.load %arg2[%c2_173, %c4_174] : memref<3x16xf32, #tpu.memory_space<smem>>
    %470 = arith.mulf %355, %463 : vector<8x128xf32>
    %471 = vector.broadcast %469 : f32 to vector<8x128xf32>
    %472 = arith.addf %471, %470 : vector<8x128xf32>
    %473 = arith.subf %472, %453 : vector<8x128xf32>
    %c2_175 = arith.constant 2 : index
    %c3_176 = arith.constant 3 : index
    %474 = memref.load %arg1[%c2_175, %c3_176] : memref<3x16xf32, #tpu.memory_space<smem>>
    %475 = arith.mulf %355, %468 : vector<8x128xf32>
    %476 = vector.broadcast %474 : f32 to vector<8x128xf32>
    %477 = arith.addf %476, %475 : vector<8x128xf32>
    %478 = arith.subf %477, %458 : vector<8x128xf32>
    %c2_177 = arith.constant 2 : index
    %c3_178 = arith.constant 3 : index
    %479 = memref.load %arg2[%c2_177, %c3_178] : memref<3x16xf32, #tpu.memory_space<smem>>
    %480 = arith.mulf %355, %473 : vector<8x128xf32>
    %481 = vector.broadcast %479 : f32 to vector<8x128xf32>
    %482 = arith.addf %481, %480 : vector<8x128xf32>
    %483 = arith.subf %482, %463 : vector<8x128xf32>
    %c2_179 = arith.constant 2 : index
    %c2_180 = arith.constant 2 : index
    %484 = memref.load %arg1[%c2_179, %c2_180] : memref<3x16xf32, #tpu.memory_space<smem>>
    %485 = arith.mulf %355, %478 : vector<8x128xf32>
    %486 = vector.broadcast %484 : f32 to vector<8x128xf32>
    %487 = arith.addf %486, %485 : vector<8x128xf32>
    %488 = arith.subf %487, %468 : vector<8x128xf32>
    %c2_181 = arith.constant 2 : index
    %c2_182 = arith.constant 2 : index
    %489 = memref.load %arg2[%c2_181, %c2_182] : memref<3x16xf32, #tpu.memory_space<smem>>
    %490 = arith.mulf %355, %483 : vector<8x128xf32>
    %491 = vector.broadcast %489 : f32 to vector<8x128xf32>
    %492 = arith.addf %491, %490 : vector<8x128xf32>
    %493 = arith.subf %492, %473 : vector<8x128xf32>
    %c2_183 = arith.constant 2 : index
    %c1_184 = arith.constant 1 : index
    %494 = memref.load %arg1[%c2_183, %c1_184] : memref<3x16xf32, #tpu.memory_space<smem>>
    %495 = arith.mulf %355, %488 : vector<8x128xf32>
    %496 = vector.broadcast %494 : f32 to vector<8x128xf32>
    %497 = arith.addf %496, %495 : vector<8x128xf32>
    %498 = arith.subf %497, %478 : vector<8x128xf32>
    %c2_185 = arith.constant 2 : index
    %c1_186 = arith.constant 1 : index
    %499 = memref.load %arg2[%c2_185, %c1_186] : memref<3x16xf32, #tpu.memory_space<smem>>
    %500 = arith.mulf %355, %493 : vector<8x128xf32>
    %501 = vector.broadcast %499 : f32 to vector<8x128xf32>
    %502 = arith.addf %501, %500 : vector<8x128xf32>
    %503 = arith.subf %502, %483 : vector<8x128xf32>
    %c2_187 = arith.constant 2 : index
    %c0_188 = arith.constant 0 : index
    %504 = memref.load %arg1[%c2_187, %c0_188] : memref<3x16xf32, #tpu.memory_space<smem>>
    %505 = arith.mulf %355, %498 : vector<8x128xf32>
    %506 = vector.broadcast %504 : f32 to vector<8x128xf32>
    %507 = arith.addf %506, %505 : vector<8x128xf32>
    %508 = arith.subf %507, %488 : vector<8x128xf32>
    %c2_189 = arith.constant 2 : index
    %c0_190 = arith.constant 0 : index
    %509 = memref.load %arg2[%c2_189, %c0_190] : memref<3x16xf32, #tpu.memory_space<smem>>
    %510 = arith.mulf %355, %503 : vector<8x128xf32>
    %511 = vector.broadcast %509 : f32 to vector<8x128xf32>
    %512 = arith.addf %511, %510 : vector<8x128xf32>
    %513 = arith.subf %512, %493 : vector<8x128xf32>
    %c2_191 = arith.constant 2 : index
    %514 = memref.load %arg3[%c2_191] : memref<3xf32, #tpu.memory_space<smem>>
    %515 = arith.mulf %352, %508 : vector<8x128xf32>
    %516 = vector.broadcast %514 : f32 to vector<8x128xf32>
    %517 = arith.addf %516, %515 : vector<8x128xf32>
    %518 = arith.mulf %353, %513 : vector<8x128xf32>
    %519 = arith.subf %518, %503 : vector<8x128xf32>
    %520 = arith.addf %517, %519 : vector<8x128xf32>
    %c2_192 = arith.constant 2 : index
    %521 = arith.index_cast %1 : i32 to index
    %c0_193 = arith.constant 0 : index
    %522 = vector.load %arg5[%c2_192, %521, %c0_193] : memref<3x8x128xf32, #tpu.memory_space<vmem>>, vector<1x8x128xf32>
    %523 = vector.shape_cast %522 : vector<1x8x128xf32> to vector<8x128xf32>
    %524 = vector.shape_cast %520 : vector<8x128xf32> to vector<1x8x128xf32>
    tpu.vector_store %arg5[%c2_192, %521, %c0_193], %524 {strides = array<i32>} : memref<3x8x128xf32, #tpu.memory_space<vmem>>, vector<1x8x128xf32>,
    %c1_i32 = arith.constant 1 : i32
    return
  }
  func.func @transform_0(%arg0: i32) -> (i32, i32) {
    %c0_i32 = arith.constant 0 : i32
    %c0_i32_0 = arith.constant 0 : i32
    %c0_i32_1 = arith.constant 0 : i32
    return %c0_i32, %c0_i32_0 : i32, i32
  }
  func.func @transform_1(%arg0: i32) -> (i32, i32) {
    %c0_i32 = arith.constant 0 : i32
    %c0_i32_0 = arith.constant 0 : i32
    %c0_i32_1 = arith.constant 0 : i32
    return %c0_i32, %c0_i32_0 : i32, i32
  }
  func.func @transform_2(%arg0: i32) -> i32 {
    %c0_i32 = arith.constant 0 : i32
    %c0_i32_0 = arith.constant 0 : i32
    return %c0_i32 : i32
  }
  func.func @transform_3(%arg0: i32) -> (i32, i32) {
    %c0_i32 = arith.constant 0 : i32
    %c0_i32_0 = arith.constant 0 : i32
    return %arg0, %c0_i32 : i32, i32
  }
  func.func @transform_4(%arg0: i32) -> (i32, i32, i32) {
    %c0_i32 = arith.constant 0 : i32
    %c0_i32_0 = arith.constant 0 : i32
    %c0_i32_1 = arith.constant 0 : i32
    return %c0_i32, %arg0, %c0_i32_0 : i32, i32, i32
  }
}

</mosaic_0001>

<llo_original>
// kernel: tpu_custom_call.1
$region0: #{tpu_custom_call.1}
  #allocation0 [shape = 'u32[]', space=smem, size = 0x4, offset = 0x4, fixed_abs, tag = 'smem constant byte address 0x4 - core index']
  #allocation1 [shape = 'u32[72,128]{1,0:T(1,128)}', space=vmem, size = 0x9000, scoped, tag = 'internal scratch']
  %s0 = inlined_call_operand.hbm [shape: f32[3,16], index: 0, kind: input, shape index: {}]
  %s1 = inlined_call_operand.hbm [shape: f32[3,16], index: 1, kind: input, shape index: {}]
  %s2 = inlined_call_operand.vmem [shape: f32[3], index: 2, kind: input, shape index: {}]
  %s3 = inlined_call_operand.hbm [shape: f32[8,128], index: 3, kind: input, shape index: {}]
  %s4 = inlined_call_operand.hbm [shape: f32[3,8,128], index: 4, kind: output, shape index: {}]
  %s5 = sld [smem:[#allocation0]]
  $region42: #{tpu_custom_call.1} parent=0
    _
  %s7 = ssub.s32 1, %s5
  %s8 = scalar_select 0, %s7, %s5
  $region1: #{tpu_custom_call.1} parent=0
    #allocation2 [shape = 'u8[2048]{0}', space=smem, size = 0x800, scoped, tag = 'input window, operand 0, single buffered']
    #allocation3 [shape = 's32[1]{0}', space=sflag, size = 0x4, scoped, tag = 'scoped memory for tpu_custom_call.1']
    #allocation4 [shape = 's32[1]{0}', space=sflag, size = 0x4, scoped, tag = 'scoped memory for tpu_custom_call.1']
    #allocation5 [shape = 's32[1]{0}', space=sflag, size = 0x4, scoped, tag = 'scoped memory for tpu_custom_call.1']
    #allocation6 [shape = 's32[1]{0}', space=sflag, size = 0x4, scoped, tag = 'scoped memory for tpu_custom_call.1']
    #allocation7 [shape = 'u8[2048]{0}', space=smem, size = 0x800, scoped, tag = 'input window, operand 1, single buffered']
    #allocation8 [shape = 's32[1]{0}', space=sflag, size = 0x4, scoped, tag = 'scoped memory for tpu_custom_call.1']
    #allocation9 [shape = 'u8[512]{0}', space=smem, size = 0x200, scoped, tag = 'input window, operand 2, single buffered']
    #allocation10 [shape = 'u8[4096]{0}', space=vmem, size = 0x1000, scoped, tag = 'input window, operand 3, single buffered']
    #allocation11 [shape = 'u8[12288]{0}', space=vmem, size = 0x3000, scoped, tag = 'output window, operand 0, single buffered']
    %9 = vsyncpa [#allocation5], 0
    %10 = vsyncpa [#allocation8], 0
    %11 = vsyncpa [#allocation6], 0
    %12 = vsyncpa [#allocation3], 0
    %13 = vsyncpa [#allocation4], 0
    // Predicated region
    $region2: #{tpu_custom_call.1} parent=1 // pred_check
      _
    $region3: #{tpu_custom_call.1} parent=1 // pred_check_branch
      %15 = sbr.rel (0) target = $region5
    $region4: #{tpu_custom_call.1} parent=1 // pred_region
      %17 = vsyncadd [#allocation5], 0
      %s19 = sshll.u32 %s0, 4
      %s20 = int_to_ptr.hbm [resolvable:$true] %s19
      %22 = dma.hbm_to_smem %s20, 64, [#allocation2], [#allocation5]
    $region5: #{tpu_custom_call.1} parent=1 // pred_fallthru
      _
    // Predicated region
    $region6: #{tpu_custom_call.1} parent=1 // pred_check
      _
    $region7: #{tpu_custom_call.1} parent=1 // pred_check_branch
      %24 = sbr.rel (0) target = $region9
    $region8: #{tpu_custom_call.1} parent=1 // pred_region
      %26 = vsyncadd [#allocation8], 0
      %s28 = sshll.u32 %s1, 4
      %s29 = int_to_ptr.hbm [resolvable:$true] %s28
      %31 = dma.hbm_to_smem %s29, 64, [#allocation7], [#allocation8]
    $region9: #{tpu_custom_call.1} parent=1 // pred_fallthru
      _
    // Predicated region
    $region10: #{tpu_custom_call.1} parent=1 // pred_check
      _
    $region11: #{tpu_custom_call.1} parent=1 // pred_check_branch
      %33 = sbr.rel (0) target = $region13
    $region12: #{tpu_custom_call.1} parent=1 // pred_region
      %35 = vsyncadd [#allocation6], 0
      %s37 = sshll.u32 %s2, 4
      %s38 = int_to_ptr.vmem [resolvable:$true] %s37
      %40 = dma.vmem_to_smem %s38, 16, [#allocation9], [#allocation6]
    $region13: #{tpu_custom_call.1} parent=1 // pred_fallthru
      _
    // Predicated region
    $region14: #{tpu_custom_call.1} parent=1 // pred_check
      _
    $region15: #{tpu_custom_call.1} parent=1 // pred_check_branch
      %42 = sbr.rel (0) target = $region17
    $region16: #{tpu_custom_call.1} parent=1 // pred_region
      %44 = vsyncadd [#allocation3], 0
      %s46 = sshll.u32 %s3, 4
      %s47 = int_to_ptr.hbm [resolvable:$true] %s46
      %s48 = sshll.u32 [#allocation10], 4
      %s49 = int_to_ptr.vmem [resolvable:$true] %s48
      %51 = dma.hbm_to_vmem [thread:$0]  %s47, 128, %s49, [#allocation3]
    $region17: #{tpu_custom_call.1} parent=1 // pred_fallthru
      _
    // Predicated region
    $region18: #{tpu_custom_call.1} parent=1 // pred_check
      _
    $region19: #{tpu_custom_call.1} parent=1 // pred_check_branch
      %53 = sbr.rel (0) target = $region21
    $region20: #{tpu_custom_call.1} parent=1 // pred_region
      %55 = dma.done [#allocation5], 64
    $region21: #{tpu_custom_call.1} parent=1 // pred_fallthru
      _
    // Predicated region
    $region22: #{tpu_custom_call.1} parent=1 // pred_check
      _
    $region23: #{tpu_custom_call.1} parent=1 // pred_check_branch
      %57 = sbr.rel (0) target = $region25
    $region24: #{tpu_custom_call.1} parent=1 // pred_region
      %59 = dma.done [#allocation8], 64
    $region25: #{tpu_custom_call.1} parent=1 // pred_fallthru
      _
    // Predicated region
    $region26: #{tpu_custom_call.1} parent=1 // pred_check
      _
    $region27: #{tpu_custom_call.1} parent=1 // pred_check_branch
      %61 = sbr.rel (0) target = $region29
    $region28: #{tpu_custom_call.1} parent=1 // pred_region
      %63 = dma.done [#allocation6], 16
    $region29: #{tpu_custom_call.1} parent=1 // pred_fallthru
      _
    // Predicated region
    $region30: #{tpu_custom_call.1} parent=1 // pred_check
      _
    $region31: #{tpu_custom_call.1} parent=1 // pred_check_branch
      %65 = sbr.rel (0) target = $region33
    $region32: #{tpu_custom_call.1} parent=1 // pred_region
      %67 = dma.done [#allocation3], 128
    $region33: #{tpu_custom_call.1} parent=1 // pred_fallthru
      _
    %68 = sfence
    %v69 = vld [vmem:[#allocation10] sm:$0xff]
    %v70 = vand.u32 2147483647, %v69
    %vm71 = vcmp.le.f32.partialorder %v70, 0.7853982
    %vm72 = vcmp.lt.s32.totalorder %v69, 0
    %v73 = vand.u32 %v69, 2139095040
    %v74 = vshrl.u32 %v73, 23
    %v75 = vsub.s32 %v74, 127
    %v76 = vand.u32 2147483647, %v69
    %v77 = vand.u32 %v76, 8388607
    %v78 = vor.u32 %v77, 8388608
    %v79 = vsub.s32 0, %v78
    %v80 = vadd.s32 %v75, 1
    %vm81 = vcmp.gt.s32.totalorder %v80, 0
    %v82 = vsel %vm81, %v80, 0
    %v83 = vshrl.u32 %v82, 5
    %v84 = vand.u32 %v82, 31
    %v85 = vsub.s32 32, %v84
    %v86 = vshrl.u32 683565275, %v85
    %v87 = vshll.u32 683565275, %v84
    %v88 = vshrl.u32 2475754826, %v85
    %v89 = vor.u32 %v87, %v88
    %v90 = vshll.u32 2475754826, %v84
    %v91 = vshrl.u32 2131351028, %v85
    %v92 = vor.u32 %v90, %v91
    %v93 = vshll.u32 2131351028, %v84
    %v94 = vshrl.u32 2102212464, %v85
    %v95 = vor.u32 %v93, %v94
    %v96 = vshll.u32 2102212464, %v84
    %v97 = vshrl.u32 920167782, %v85
    %v98 = vor.u32 %v96, %v97
    %v99 = vshll.u32 920167782, %v84
    %v100 = vshrl.u32 1326507024, %v85
    %v101 = vor.u32 %v99, %v100
    %vm102 = vcmp.lt.s32.totalorder %v83, 1
    %vm103 = vcmp.lt.s32.totalorder %v83, 2
    %vm104 = vcmp.lt.s32.totalorder %v83, 3
    %vm105 = vcmp.lt.s32.totalorder %v83, 4
    %v106 = vsel %vm102, %v86, %v89
    %v107 = vsel %vm105, %v95, 2102212464
    %v108 = vsel %vm104, %v92, %v107
    %v109 = vsel %vm103, %v106, %v108
    %v110 = vsel %vm102, %v89, %v92
    %v111 = vsel %vm105, %v98, 920167782
    %v112 = vsel %vm104, %v95, %v111
    %v113 = vsel %vm103, %v110, %v112
    %v114 = vsel %vm102, %v92, %v95
    %v115 = vsel %vm105, %v101, 1326507024
    %v116 = vsel %vm104, %v98, %v115
    %v117 = vsel %vm103, %v114, %v116
    %v118 = vshll.u32 %v78, 8
    %v119 = vand.u32 %v118, 65535
    %v120 = vshrl.u32 %v118, 16
    %v121 = vand.u32 %v117, 65535
    %v122 = vshrl.u32 %v117, 16
    %v123 = vmul.u32 %v119, %v121
    %v124 = vmul.u32 %v119, %v122
    %v125 = vmul.u32 %v120, %v121
    %v126 = vmul.u32 %v120, %v122
    %v127 = vshll.u32 %v124, 16
    %v128 = vshrl.u32 %v124, 16
    %v129 = vshll.u32 %v125, 16
    %v130 = vshrl.u32 %v125, 16
    %vm131 = vc.u32 %v123, %v127
    %v132 = vsel %vm131, 1, 0
    %v133 = vadd.s32 %v123, %v127
    %v134 = vadd.s32 %v126, %v132
    %vm135 = vc.u32 %v133, %v129
    %v136 = vsel %vm135, 1, 0
    %v137 = vadd.s32 %v133, %v129
    %v138 = vadd.s32 %v134, %v136
    %v139 = vadd.s32 %v138, %v128
    %v140 = vadd.s32 %v139, %v130
    %v141 = vand.u32 %v118, 65535
    %v142 = vshrl.u32 %v118, 16
    %v143 = vand.u32 %v113, 65535
    %v144 = vshrl.u32 %v113, 16
    %v145 = vmul.u32 %v141, %v143
    %v146 = vmul.u32 %v141, %v144
    %v147 = vmul.u32 %v142, %v143
    %v148 = vmul.u32 %v142, %v144
    %v149 = vshll.u32 %v146, 16
    %v150 = vshrl.u32 %v146, 16
    %v151 = vshll.u32 %v147, 16
    %v152 = vshrl.u32 %v147, 16
    %vm153 = vc.u32 %v145, %v149
    %v154 = vsel %vm153, 1, 0
    %v155 = vadd.s32 %v145, %v149
    %v156 = vadd.s32 %v148, %v154
    %vm157 = vc.u32 %v155, %v151
    %v158 = vsel %vm157, 1, 0
    %v159 = vadd.s32 %v155, %v151
    %v160 = vadd.s32 %v156, %v158
    %v161 = vadd.s32 %v160, %v150
    %v162 = vadd.s32 %v161, %v152
    %v163 = vmul.u32 %v118, %v109
    %v164 = vadd.s32 %v140, %v159
    %vm165 = vc.u32 %v140, %v159
    %v166 = vadd.s32 %v162, 1
    %v167 = vsel %vm165, %v166, %v162
    %v168 = vadd.s32 %v163, %v167
    %v169 = vadd.s32 %v168, 536870912
    %v170 = vshrl.u32 %v169, 30
    %v171 = vshll.u32 %v170, 30
    %v172 = vsub.s32 %v168, %v171
    %vm173 = vcmp.lt.s32.totalorder %v172, 0
    %v174 = vsub.s32 0, %v172
    %v175 = vsel %vm173, %v174, %v172
    %v176 = vclz %v175
    %v177 = vsub.s32 %v176, 2
    %vm178 = vcmp.gt.s32.totalorder 0, %v177
    %v179 = vsel %vm178, 0, %v177
    %v180 = vsub.s32 32, %v179
    %v181 = vshll.u32 %v172, %v179
    %v182 = vshrl.u32 %v164, %v180
    %v183 = vor.u32 %v181, %v182
    %v184 = vsub.s32 4294967266, %v179
    %v185 = vadd.s32 %v184, 127
    %v186 = vshll.u32 %v185, 23
    %v187 = vor.u32 4788187, %v186
    %v188 = vand.u32 2147483647, %v187
    %v190 = vcvt.s32.f32 %v183
    %v191 = vmul.f32 %v190, %v188
    %v192 = vxor.u32 %v191, 2147483648
    %v193 = vsel %vm72, %v192, %v191
    %v194 = vsub.s32 4, %v170
    %v195 = vsel %vm72, %v194, %v170
    %v196 = vsel %vm71, %v69, %v193
    %v197 = vsel %vm71, 0, %v195
    %v198 = vmul.f32 %v196, %v196
    %v199 = vmul.f32 %v198, -0.001358992
    %v200 = vadd.f32 %v199, 0.041655596
    %v201 = vmul.f32 %v198, %v200
    %v202 = vadd.f32 %v201, -0.4999988
    %v203 = vmul.f32 %v198, %v202
    %v204 = vadd.f32 1.0, %v203
    %v205 = vmul.f32 %v196, %v196
    %v206 = vmul.f32 %v205, -0.00019511016
    %v207 = vadd.f32 %v206, 0.008332121
    %v208 = vmul.f32 %v205, %v207
    %v209 = vadd.f32 %v208, -0.16666654
    %v210 = vmul.f32 %v205, %v209
    %v211 = vadd.f32 %v210, 1.0
    %v212 = vmul.f32 %v211, %v196
    %vm213 = vweird.f32 %v69
    %v214 = vadd.s32 %v197, 3
    %v215 = vand.u32 %v214, 3
    %vm216 = vcmp.lt.s32.totalorder %v215, 2
    %vm217 = vcmp.eq.s32.totalorder %v215, 0
    %v218 = vxor.u32 %v212, 2147483648
    %v219 = vsel %vm217, %v204, %v218
    %vm220 = vcmp.eq.s32.totalorder %v215, 2
    %v221 = vxor.u32 %v204, 2147483648
    %v222 = vsel %vm220, %v221, %v212
    %v223 = vsel %vm216, %v219, %v222
    %v224 = vsel %vm213, nan, %v223
    %v225 = vand.u32 2147483647, %v69
    %vm226 = vcmp.le.f32.partialorder %v225, 0.7853982
    %vm227 = vcmp.lt.s32.totalorder %v69, 0
    %v228 = vand.u32 %v69, 2139095040
    %v229 = vshrl.u32 %v228, 23
    %v230 = vsub.s32 %v229, 127
    %v231 = vand.u32 2147483647, %v69
    %v232 = vand.u32 %v231, 8388607
    %v233 = vor.u32 %v232, 8388608
    %v234 = vsub.s32 0, %v233
    %v235 = vadd.s32 %v230, 1
    %vm236 = vcmp.gt.s32.totalorder %v235, 0
    %v237 = vsel %vm236, %v235, 0
    %v238 = vshrl.u32 %v237, 5
    %v239 = vand.u32 %v237, 31
    %v240 = vsub.s32 32, %v239
    %v241 = vshrl.u32 683565275, %v240
    %v242 = vshll.u32 683565275, %v239
    %v243 = vshrl.u32 2475754826, %v240
    %v244 = vor.u32 %v242, %v243
    %v245 = vshll.u32 2475754826, %v239
    %v246 = vshrl.u32 2131351028, %v240
    %v247 = vor.u32 %v245, %v246
    %v248 = vshll.u32 2131351028, %v239
    %v249 = vshrl.u32 2102212464, %v240
    %v250 = vor.u32 %v248, %v249
    %v251 = vshll.u32 2102212464, %v239
    %v252 = vshrl.u32 920167782, %v240
    %v253 = vor.u32 %v251, %v252
    %v254 = vshll.u32 920167782, %v239
    %v255 = vshrl.u32 1326507024, %v240
    %v256 = vor.u32 %v254, %v255
    %vm257 = vcmp.lt.s32.totalorder %v238, 1
    %vm258 = vcmp.lt.s32.totalorder %v238, 2
    %vm259 = vcmp.lt.s32.totalorder %v238, 3
    %vm260 = vcmp.lt.s32.totalorder %v238, 4
    %v261 = vsel %vm257, %v241, %v244
    %v262 = vsel %vm260, %v250, 2102212464
    %v263 = vsel %vm259, %v247, %v262
    %v264 = vsel %vm258, %v261, %v263
    %v265 = vsel %vm257, %v244, %v247
    %v266 = vsel %vm260, %v253, 920167782
    %v267 = vsel %vm259, %v250, %v266
    %v268 = vsel %vm258, %v265, %v267
    %v269 = vsel %vm257, %v247, %v250
    %v270 = vsel %vm260, %v256, 1326507024
    %v271 = vsel %vm259, %v253, %v270
    %v272 = vsel %vm258, %v269, %v271
    %v273 = vshll.u32 %v233, 8
    %v274 = vand.u32 %v273, 65535
    %v275 = vshrl.u32 %v273, 16
    %v276 = vand.u32 %v272, 65535
    %v277 = vshrl.u32 %v272, 16
    %v278 = vmul.u32 %v274, %v276
    %v279 = vmul.u32 %v274, %v277
    %v280 = vmul.u32 %v275, %v276
    %v281 = vmul.u32 %v275, %v277
    %v282 = vshll.u32 %v279, 16
    %v283 = vshrl.u32 %v279, 16
    %v284 = vshll.u32 %v280, 16
    %v285 = vshrl.u32 %v280, 16
    %vm286 = vc.u32 %v278, %v282
    %v287 = vsel %vm286, 1, 0
    %v288 = vadd.s32 %v278, %v282
    %v289 = vadd.s32 %v281, %v287
    %vm290 = vc.u32 %v288, %v284
    %v291 = vsel %vm290, 1, 0
    %v292 = vadd.s32 %v288, %v284
    %v293 = vadd.s32 %v289, %v291
    %v294 = vadd.s32 %v293, %v283
    %v295 = vadd.s32 %v294, %v285
    %v296 = vand.u32 %v273, 65535
    %v297 = vshrl.u32 %v273, 16
    %v298 = vand.u32 %v268, 65535
    %v299 = vshrl.u32 %v268, 16
    %v300 = vmul.u32 %v296, %v298
    %v301 = vmul.u32 %v296, %v299
    %v302 = vmul.u32 %v297, %v298
    %v303 = vmul.u32 %v297, %v299
    %v304 = vshll.u32 %v301, 16
    %v305 = vshrl.u32 %v301, 16
    %v306 = vshll.u32 %v302, 16
    %v307 = vshrl.u32 %v302, 16
    %vm308 = vc.u32 %v300, %v304
    %v309 = vsel %vm308, 1, 0
    %v310 = vadd.s32 %v300, %v304
    %v311 = vadd.s32 %v303, %v309
    %vm312 = vc.u32 %v310, %v306
    %v313 = vsel %vm312, 1, 0
    %v314 = vadd.s32 %v310, %v306
    %v315 = vadd.s32 %v311, %v313
    %v316 = vadd.s32 %v315, %v305
    %v317 = vadd.s32 %v316, %v307
    %v318 = vmul.u32 %v273, %v264
    %v319 = vadd.s32 %v295, %v314
    %vm320 = vc.u32 %v295, %v314
    %v321 = vadd.s32 %v317, 1
    %v322 = vsel %vm320, %v321, %v317
    %v323 = vadd.s32 %v318, %v322
    %v324 = vadd.s32 %v323, 536870912
    %v325 = vshrl.u32 %v324, 30
    %v326 = vshll.u32 %v325, 30
    %v327 = vsub.s32 %v323, %v326
    %vm328 = vcmp.lt.s32.totalorder %v327, 0
    %v329 = vsub.s32 0, %v327
    %v330 = vsel %vm328, %v329, %v327
    %v331 = vclz %v330
    %v332 = vsub.s32 %v331, 2
    %vm333 = vcmp.gt.s32.totalorder 0, %v332
    %v334 = vsel %vm333, 0, %v332
    %v335 = vsub.s32 32, %v334
    %v336 = vshll.u32 %v327, %v334
    %v337 = vshrl.u32 %v319, %v335
    %v338 = vor.u32 %v336, %v337
    %v339 = vsub.s32 4294967266, %v334
    %v340 = vadd.s32 %v339, 127
    %v341 = vshll.u32 %v340, 23
    %v342 = vor.u32 4788187, %v341
    %v343 = vand.u32 2147483647, %v342
    %v345 = vcvt.s32.f32 %v338
    %v346 = vmul.f32 %v345, %v343
    %v347 = vxor.u32 %v346, 2147483648
    %v348 = vsel %vm227, %v347, %v346
    %v349 = vsub.s32 4, %v325
    %v350 = vsel %vm227, %v349, %v325
    %v351 = vsel %vm226, %v69, %v348
    %v352 = vsel %vm226, 0, %v350
    %v353 = vmul.f32 %v351, %v351
    %v354 = vmul.f32 %v353, -0.001358992
    %v355 = vadd.f32 %v354, 0.041655596
    %v356 = vmul.f32 %v353, %v355
    %v357 = vadd.f32 %v356, -0.4999988
    %v358 = vmul.f32 %v353, %v357
    %v359 = vadd.f32 1.0, %v358
    %v360 = vmul.f32 %v351, %v351
    %v361 = vmul.f32 %v360, -0.00019511016
    %v362 = vadd.f32 %v361, 0.008332121
    %v363 = vmul.f32 %v360, %v362
    %v364 = vadd.f32 %v363, -0.16666654
    %v365 = vmul.f32 %v360, %v364
    %v366 = vadd.f32 %v365, 1.0
    %v367 = vmul.f32 %v366, %v351
    %vm368 = vweird.f32 %v69
    %v369 = vand.u32 %v352, 3
    %vm370 = vcmp.lt.s32.totalorder %v369, 2
    %vm371 = vcmp.eq.s32.totalorder %v369, 0
    %v372 = vxor.u32 %v367, 2147483648
    %v373 = vsel %vm371, %v359, %v372
    %vm374 = vcmp.eq.s32.totalorder %v369, 2
    %v375 = vxor.u32 %v359, 2147483648
    %v376 = vsel %vm374, %v375, %v367
    %v377 = vsel %vm370, %v373, %v376
    %v378 = vsel %vm368, nan, %v377
    %v379 = vmul.f32 %v378, 2.0
    %s380 = sld [smem:[#allocation2 + $0xf]]
    %s381 = sld [smem:[#allocation7 + $0xf]]
    %s382 = sld [smem:[#allocation2 + $0xe]]
    %v383 = vstv %s380
    %v384 = vmul.f32 %v379, %v383
    %v385 = vstv %s382
    %v386 = vadd.f32 %v385, %v384
    %s387 = sld [smem:[#allocation7 + $0xe]]
    %v388 = vstv %s381
    %v389 = vmul.f32 %v379, %v388
    %v390 = vstv %s387
    %v391 = vadd.f32 %v390, %v389
    %s392 = sld [smem:[#allocation2 + $0xd]]
    %v393 = vmul.f32 %v379, %v386
    %v394 = vstv %s392
    %v395 = vadd.f32 %v394, %v393
    %v396 = vsub.f32 %v395, %v383
    %s397 = sld [smem:[#allocation7 + $0xd]]
    %v398 = vmul.f32 %v379, %v391
    %v399 = vstv %s397
    %v400 = vadd.f32 %v399, %v398
    %v401 = vsub.f32 %v400, %v388
    %s402 = sld [smem:[#allocation2 + $0xc]]
    %v403 = vmul.f32 %v379, %v396
    %v404 = vstv %s402
    %v405 = vadd.f32 %v404, %v403
    %v406 = vsub.f32 %v405, %v386
    %s407 = sld [smem:[#allocation7 + $0xc]]
    %v408 = vmul.f32 %v379, %v401
    %v409 = vstv %s407
    %v410 = vadd.f32 %v409, %v408
    %v411 = vsub.f32 %v410, %v391
    %s412 = sld [smem:[#allocation2 + $0xb]]
    %v413 = vmul.f32 %v379, %v406
    %v414 = vstv %s412
    %v415 = vadd.f32 %v414, %v413
    %v416 = vsub.f32 %v415, %v396
    %s417 = sld [smem:[#allocation7 + $0xb]]
    %v418 = vmul.f32 %v379, %v411
    %v419 = vstv %s417
    %v420 = vadd.f32 %v419, %v418
    %v421 = vsub.f32 %v420, %v401
    %s422 = sld [smem:[#allocation2 + $0xa]]
    %v423 = vmul.f32 %v379, %v416
    %v424 = vstv %s422
    %v425 = vadd.f32 %v424, %v423
    %v426 = vsub.f32 %v425, %v406
    %s427 = sld [smem:[#allocation7 + $0xa]]
    %v428 = vmul.f32 %v379, %v421
    %v429 = vstv %s427
    %v430 = vadd.f32 %v429, %v428
    %v431 = vsub.f32 %v430, %v411
    %s432 = sld [smem:[#allocation2 + $0x9]]
    %v433 = vmul.f32 %v379, %v426
    %v434 = vstv %s432
    %v435 = vadd.f32 %v434, %v433
    %v436 = vsub.f32 %v435, %v416
    %s437 = sld [smem:[#allocation7 + $0x9]]
    %v438 = vmul.f32 %v379, %v431
    %v439 = vstv %s437
    %v440 = vadd.f32 %v439, %v438
    %v441 = vsub.f32 %v440, %v421
    %s442 = sld [smem:[#allocation2 + $0x8]]
    %v443 = vmul.f32 %v379, %v436
    %v444 = vstv %s442
    %v445 = vadd.f32 %v444, %v443
    %v446 = vsub.f32 %v445, %v426
    %s447 = sld [smem:[#allocation7 + $0x8]]
    %v448 = vmul.f32 %v379, %v441
    %v449 = vstv %s447
    %v450 = vadd.f32 %v449, %v448
    %v451 = vsub.f32 %v450, %v431
    %s452 = sld [smem:[#allocation2 + $0x7]]
    %v453 = vmul.f32 %v379, %v446
    %v454 = vstv %s452
    %v455 = vadd.f32 %v454, %v453
    %v456 = vsub.f32 %v455, %v436
    %s457 = sld [smem:[#allocation7 + $0x7]]
    %v458 = vmul.f32 %v379, %v451
    %v459 = vstv %s457
    %v460 = vadd.f32 %v459, %v458
    %v461 = vsub.f32 %v460, %v441
    %s462 = sld [smem:[#allocation2 + $0x6]]
    %v463 = vmul.f32 %v379, %v456
    %v464 = vstv %s462
    %v465 = vadd.f32 %v464, %v463
    %v466 = vsub.f32 %v465, %v446
    %s467 = sld [smem:[#allocation7 + $0x6]]
    %v468 = vmul.f32 %v379, %v461
    %v469 = vstv %s467
    %v470 = vadd.f32 %v469, %v468
    %v471 = vsub.f32 %v470, %v451
    %s472 = sld [smem:[#allocation2 + $0x5]]
    %v473 = vmul.f32 %v379, %v466
    %v474 = vstv %s472
    %v475 = vadd.f32 %v474, %v473
    %v476 = vsub.f32 %v475, %v456
    %s477 = sld [smem:[#allocation7 + $0x5]]
    %v478 = vmul.f32 %v379, %v471
    %v479 = vstv %s477
    %v480 = vadd.f32 %v479, %v478
    %v481 = vsub.f32 %v480, %v461
    %s482 = sld [smem:[#allocation2 + $0x4]]
    %v483 = vmul.f32 %v379, %v476
    %v484 = vstv %s482
    %v485 = vadd.f32 %v484, %v483
    %v486 = vsub.f32 %v485, %v466
    %s487 = sld [smem:[#allocation7 + $0x4]]
    %v488 = vmul.f32 %v379, %v481
    %v489 = vstv %s487
    %v490 = vadd.f32 %v489, %v488
    %v491 = vsub.f32 %v490, %v471
    %s492 = sld [smem:[#allocation2 + $0x3]]
    %v493 = vmul.f32 %v379, %v486
    %v494 = vstv %s492
    %v495 = vadd.f32 %v494, %v493
    %v496 = vsub.f32 %v495, %v476
    %s497 = sld [smem:[#allocation7 + $0x3]]
    %v498 = vmul.f32 %v379, %v491
    %v499 = vstv %s497
    %v500 = vadd.f32 %v499, %v498
    %v501 = vsub.f32 %v500, %v481
    %s502 = sld [smem:[#allocation2 + $0x2]]
    %v503 = vmul.f32 %v379, %v496
    %v504 = vstv %s502
    %v505 = vadd.f32 %v504, %v503
    %v506 = vsub.f32 %v505, %v486
    %s507 = sld [smem:[#allocation7 + $0x2]]
    %v508 = vmul.f32 %v379, %v501
    %v509 = vstv %s507
    %v510 = vadd.f32 %v509, %v508
    %v511 = vsub.f32 %v510, %v491
    %s512 = sld [smem:[#allocation2 + $0x1]]
    %v513 = vmul.f32 %v379, %v506
    %v514 = vstv %s512
    %v515 = vadd.f32 %v514, %v513
    %v516 = vsub.f32 %v515, %v496
    %s517 = sld [smem:[#allocation7 + $0x1]]
    %v518 = vmul.f32 %v379, %v511
    %v519 = vstv %s517
    %v520 = vadd.f32 %v519, %v518
    %v521 = vsub.f32 %v520, %v501
    %s522 = sld [smem:[#allocation2]]
    %v523 = vmul.f32 %v379, %v516
    %v524 = vstv %s522
    %v525 = vadd.f32 %v524, %v523
    %v526 = vsub.f32 %v525, %v506
    %s527 = sld [smem:[#allocation7]]
    %v528 = vmul.f32 %v379, %v521
    %v529 = vstv %s527
    %v530 = vadd.f32 %v529, %v528
    %v531 = vsub.f32 %v530, %v511
    %s532 = sld [smem:[#allocation9]]
    %v533 = vmul.f32 %v224, %v526
    %v534 = vstv %s532
    %v535 = vadd.f32 %v534, %v533
    %v536 = vmul.f32 %v378, %v531
    %v537 = vsub.f32 %v536, %v521
    %v538 = vadd.f32 %v535, %v537
    %539 = vst [vmem:[#allocation11] sm:$0xff] %v538
    %v540 = vmul.f32 %v69, %v69
    %v541 = vand.u32 2147483647, %v540
    %vm542 = vcmp.le.f32.partialorder %v541, 0.7853982
    %vm543 = vcmp.lt.s32.totalorder %v540, 0
    %v544 = vand.u32 %v540, 2139095040
    %v545 = vshrl.u32 %v544, 23
    %v546 = vsub.s32 %v545, 127
    %v547 = vand.u32 2147483647, %v540
    %v548 = vand.u32 %v547, 8388607
    %v549 = vor.u32 %v548, 8388608
    %v550 = vsub.s32 0, %v549
    %v551 = vadd.s32 %v546, 1
    %vm552 = vcmp.gt.s32.totalorder %v551, 0
    %v553 = vsel %vm552, %v551, 0
    %v554 = vshrl.u32 %v553, 5
    %v555 = vand.u32 %v553, 31
    %v556 = vsub.s32 32, %v555
    %v557 = vshrl.u32 683565275, %v556
    %v558 = vshll.u32 683565275, %v555
    %v559 = vshrl.u32 2475754826, %v556
    %v560 = vor.u32 %v558, %v559
    %v561 = vshll.u32 2475754826, %v555
    %v562 = vshrl.u32 2131351028, %v556
    %v563 = vor.u32 %v561, %v562
    %v564 = vshll.u32 2131351028, %v555
    %v565 = vshrl.u32 2102212464, %v556
    %v566 = vor.u32 %v564, %v565
    %v567 = vshll.u32 2102212464, %v555
    %v568 = vshrl.u32 920167782, %v556
    %v569 = vor.u32 %v567, %v568
    %v570 = vshll.u32 920167782, %v555
    %v571 = vshrl.u32 1326507024, %v556
    %v572 = vor.u32 %v570, %v571
    %vm573 = vcmp.lt.s32.totalorder %v554, 1
    %vm574 = vcmp.lt.s32.totalorder %v554, 2
    %vm575 = vcmp.lt.s32.totalorder %v554, 3
    %vm576 = vcmp.lt.s32.totalorder %v554, 4
    %v577 = vsel %vm573, %v557, %v560
    %v578 = vsel %vm576, %v566, 2102212464
    %v579 = vsel %vm575, %v563, %v578
    %v580 = vsel %vm574, %v577, %v579
    %v581 = vsel %vm573, %v560, %v563
    %v582 = vsel %vm576, %v569, 920167782
    %v583 = vsel %vm575, %v566, %v582
    %v584 = vsel %vm574, %v581, %v583
    %v585 = vsel %vm573, %v563, %v566
    %v586 = vsel %vm576, %v572, 1326507024
    %v587 = vsel %vm575, %v569, %v586
    %v588 = vsel %vm574, %v585, %v587
    %v589 = vshll.u32 %v549, 8
    %v590 = vand.u32 %v589, 65535
    %v591 = vshrl.u32 %v589, 16
    %v592 = vand.u32 %v588, 65535
    %v593 = vshrl.u32 %v588, 16
    %v594 = vmul.u32 %v590, %v592
    %v595 = vmul.u32 %v590, %v593
    %v596 = vmul.u32 %v591, %v592
    %v597 = vmul.u32 %v591, %v593
    %v598 = vshll.u32 %v595, 16
    %v599 = vshrl.u32 %v595, 16
    %v600 = vshll.u32 %v596, 16
    %v601 = vshrl.u32 %v596, 16
    %vm602 = vc.u32 %v594, %v598
    %v603 = vsel %vm602, 1, 0
    %v604 = vadd.s32 %v594, %v598
    %v605 = vadd.s32 %v597, %v603
    %vm606 = vc.u32 %v604, %v600
    %v607 = vsel %vm606, 1, 0
    %v608 = vadd.s32 %v604, %v600
    %v609 = vadd.s32 %v605, %v607
    %v610 = vadd.s32 %v609, %v599
    %v611 = vadd.s32 %v610, %v601
    %v612 = vand.u32 %v589, 65535
    %v613 = vshrl.u32 %v589, 16
    %v614 = vand.u32 %v584, 65535
    %v615 = vshrl.u32 %v584, 16
    %v616 = vmul.u32 %v612, %v614
    %v617 = vmul.u32 %v612, %v615
    %v618 = vmul.u32 %v613, %v614
    %v619 = vmul.u32 %v613, %v615
    %v620 = vshll.u32 %v617, 16
    %v621 = vshrl.u32 %v617, 16
    %v622 = vshll.u32 %v618, 16
    %v623 = vshrl.u32 %v618, 16
    %vm624 = vc.u32 %v616, %v620
    %v625 = vsel %vm624, 1, 0
    %v626 = vadd.s32 %v616, %v620
    %v627 = vadd.s32 %v619, %v625
    %vm628 = vc.u32 %v626, %v622
    %v629 = vsel %vm628, 1, 0
    %v630 = vadd.s32 %v626, %v622
    %v631 = vadd.s32 %v627, %v629
    %v632 = vadd.s32 %v631, %v621
    %v633 = vadd.s32 %v632, %v623
    %v634 = vmul.u32 %v589, %v580
    %v635 = vadd.s32 %v611, %v630
    %vm636 = vc.u32 %v611, %v630
    %v637 = vadd.s32 %v633, 1
    %v638 = vsel %vm636, %v637, %v633
    %v639 = vadd.s32 %v634, %v638
    %v640 = vadd.s32 %v639, 536870912
    %v641 = vshrl.u32 %v640, 30
    %v642 = vshll.u32 %v641, 30
    %v643 = vsub.s32 %v639, %v642
    %vm644 = vcmp.lt.s32.totalorder %v643, 0
    %v645 = vsub.s32 0, %v643
    %v646 = vsel %vm644, %v645, %v643
    %v647 = vclz %v646
    %v648 = vsub.s32 %v647, 2
    %vm649 = vcmp.gt.s32.totalorder 0, %v648
    %v650 = vsel %vm649, 0, %v648
    %v651 = vsub.s32 32, %v650
    %v652 = vshll.u32 %v643, %v650
    %v653 = vshrl.u32 %v635, %v651
    %v654 = vor.u32 %v652, %v653
    %v655 = vsub.s32 4294967266, %v650
    %v656 = vadd.s32 %v655, 127
    %v657 = vshll.u32 %v656, 23
    %v658 = vor.u32 4788187, %v657
    %v659 = vand.u32 2147483647, %v658
    %v661 = vcvt.s32.f32 %v654
    %v662 = vmul.f32 %v661, %v659
    %v663 = vxor.u32 %v662, 2147483648
    %v664 = vsel %vm543, %v663, %v662
    %v665 = vsub.s32 4, %v641
    %v666 = vsel %vm543, %v665, %v641
    %v667 = vsel %vm542, %v540, %v664
    %v668 = vsel %vm542, 0, %v666
    %v669 = vmul.f32 %v667, %v667
    %v670 = vmul.f32 %v669, -0.001358992
    %v671 = vadd.f32 %v670, 0.041655596
    %v672 = vmul.f32 %v669, %v671
    %v673 = vadd.f32 %v672, -0.4999988
    %v674 = vmul.f32 %v669, %v673
    %v675 = vadd.f32 1.0, %v674
    %v676 = vmul.f32 %v667, %v667
    %v677 = vmul.f32 %v676, -0.00019511016
    %v678 = vadd.f32 %v677, 0.008332121
    %v679 = vmul.f32 %v676, %v678
    %v680 = vadd.f32 %v679, -0.16666654
    %v681 = vmul.f32 %v676, %v680
    %v682 = vadd.f32 %v681, 1.0
    %v683 = vmul.f32 %v682, %v667
    %vm684 = vweird.f32 %v540
    %v685 = vadd.s32 %v668, 3
    %v686 = vand.u32 %v685, 3
    %vm687 = vcmp.lt.s32.totalorder %v686, 2
    %vm688 = vcmp.eq.s32.totalorder %v686, 0
    %v689 = vxor.u32 %v683, 2147483648
    %v690 = vsel %vm688, %v675, %v689
    %vm691 = vcmp.eq.s32.totalorder %v686, 2
    %v692 = vxor.u32 %v675, 2147483648
    %v693 = vsel %vm691, %v692, %v683
    %v694 = vsel %vm687, %v690, %v693
    %v695 = vsel %vm684, nan, %v694
    %v696 = vand.u32 2147483647, %v540
    %vm697 = vcmp.le.f32.partialorder %v696, 0.7853982
    %vm698 = vcmp.lt.s32.totalorder %v540, 0
    %v699 = vand.u32 %v540, 2139095040
    %v700 = vshrl.u32 %v699, 23
    %v701 = vsub.s32 %v700, 127
    %v702 = vand.u32 2147483647, %v540
    %v703 = vand.u32 %v702, 8388607
    %v704 = vor.u32 %v703, 8388608
    %v705 = vsub.s32 0, %v704
    %v706 = vadd.s32 %v701, 1
    %vm707 = vcmp.gt.s32.totalorder %v706, 0
    %v708 = vsel %vm707, %v706, 0
    %v709 = vshrl.u32 %v708, 5
    %v710 = vand.u32 %v708, 31
    %v711 = vsub.s32 32, %v710
    %v712 = vshrl.u32 683565275, %v711
    %v713 = vshll.u32 683565275, %v710
    %v714 = vshrl.u32 2475754826, %v711
    %v715 = vor.u32 %v713, %v714
    %v716 = vshll.u32 2475754826, %v710
    %v717 = vshrl.u32 2131351028, %v711
    %v718 = vor.u32 %v716, %v717
    %v719 = vshll.u32 2131351028, %v710
    %v720 = vshrl.u32 2102212464, %v711
    %v721 = vor.u32 %v719, %v720
    %v722 = vshll.u32 2102212464, %v710
    %v723 = vshrl.u32 920167782, %v711
    %v724 = vor.u32 %v722, %v723
    %v725 = vshll.u32 920167782, %v710
    %v726 = vshrl.u32 1326507024, %v711
    %v727 = vor.u32 %v725, %v726
    %vm728 = vcmp.lt.s32.totalorder %v709, 1
    %vm729 = vcmp.lt.s32.totalorder %v709, 2
    %vm730 = vcmp.lt.s32.totalorder %v709, 3
    %vm731 = vcmp.lt.s32.totalorder %v709, 4
    %v732 = vsel %vm728, %v712, %v715
    %v733 = vsel %vm731, %v721, 2102212464
    %v734 = vsel %vm730, %v718, %v733
    %v735 = vsel %vm729, %v732, %v734
    %v736 = vsel %vm728, %v715, %v718
    %v737 = vsel %vm731, %v724, 920167782
    %v738 = vsel %vm730, %v721, %v737
    %v739 = vsel %vm729, %v736, %v738
    %v740 = vsel %vm728, %v718, %v721
    %v741 = vsel %vm731, %v727, 1326507024
    %v742 = vsel %vm730, %v724, %v741
    %v743 = vsel %vm729, %v740, %v742
    %v744 = vshll.u32 %v704, 8
    %v745 = vand.u32 %v744, 65535
    %v746 = vshrl.u32 %v744, 16
    %v747 = vand.u32 %v743, 65535
    %v748 = vshrl.u32 %v743, 16
    %v749 = vmul.u32 %v745, %v747
    %v750 = vmul.u32 %v745, %v748
    %v751 = vmul.u32 %v746, %v747
    %v752 = vmul.u32 %v746, %v748
    %v753 = vshll.u32 %v750, 16
    %v754 = vshrl.u32 %v750, 16
    %v755 = vshll.u32 %v751, 16
    %v756 = vshrl.u32 %v751, 16
    %vm757 = vc.u32 %v749, %v753
    %v758 = vsel %vm757, 1, 0
    %v759 = vadd.s32 %v749, %v753
    %v760 = vadd.s32 %v752, %v758
    %vm761 = vc.u32 %v759, %v755
    %v762 = vsel %vm761, 1, 0
    %v763 = vadd.s32 %v759, %v755
    %v764 = vadd.s32 %v760, %v762
    %v765 = vadd.s32 %v764, %v754
    %v766 = vadd.s32 %v765, %v756
    %v767 = vand.u32 %v744, 65535
    %v768 = vshrl.u32 %v744, 16
    %v769 = vand.u32 %v739, 65535
    %v770 = vshrl.u32 %v739, 16
    %v771 = vmul.u32 %v767, %v769
    %v772 = vmul.u32 %v767, %v770
    %v773 = vmul.u32 %v768, %v769
    %v774 = vmul.u32 %v768, %v770
    %v775 = vshll.u32 %v772, 16
    %v776 = vshrl.u32 %v772, 16
    %v777 = vshll.u32 %v773, 16
    %v778 = vshrl.u32 %v773, 16
    %vm779 = vc.u32 %v771, %v775
    %v780 = vsel %vm779, 1, 0
    %v781 = vadd.s32 %v771, %v775
    %v782 = vadd.s32 %v774, %v780
    %vm783 = vc.u32 %v781, %v777
    %v784 = vsel %vm783, 1, 0
    %v785 = vadd.s32 %v781, %v777
    %v786 = vadd.s32 %v782, %v784
    %v787 = vadd.s32 %v786, %v776
    %v788 = vadd.s32 %v787, %v778
    %v789 = vmul.u32 %v744, %v735
    %v790 = vadd.s32 %v766, %v785
    %vm791 = vc.u32 %v766, %v785
    %v792 = vadd.s32 %v788, 1
    %v793 = vsel %vm791, %v792, %v788
    %v794 = vadd.s32 %v789, %v793
    %v795 = vadd.s32 %v794, 536870912
    %v796 = vshrl.u32 %v795, 30
    %v797 = vshll.u32 %v796, 30
    %v798 = vsub.s32 %v794, %v797
    %vm799 = vcmp.lt.s32.totalorder %v798, 0
    %v800 = vsub.s32 0, %v798
    %v801 = vsel %vm799, %v800, %v798
    %v802 = vclz %v801
    %v803 = vsub.s32 %v802, 2
    %vm804 = vcmp.gt.s32.totalorder 0, %v803
    %v805 = vsel %vm804, 0, %v803
    %v806 = vsub.s32 32, %v805
    %v807 = vshll.u32 %v798, %v805
    %v808 = vshrl.u32 %v790, %v806
    %v809 = vor.u32 %v807, %v808
    %v810 = vsub.s32 4294967266, %v805
    %v811 = vadd.s32 %v810, 127
    %v812 = vshll.u32 %v811, 23
    %v813 = vor.u32 4788187, %v812
    %v814 = vand.u32 2147483647, %v813
    %v816 = vcvt.s32.f32 %v809
    %v817 = vmul.f32 %v816, %v814
    %v818 = vxor.u32 %v817, 2147483648
    %v819 = vsel %vm698, %v818, %v817
    %v820 = vsub.s32 4, %v796
    %v821 = vsel %vm698, %v820, %v796
    %v822 = vsel %vm697, %v540, %v819
    %v823 = vsel %vm697, 0, %v821
    %v824 = vmul.f32 %v822, %v822
    %v825 = vmul.f32 %v824, -0.001358992
    %v826 = vadd.f32 %v825, 0.041655596
    %v827 = vmul.f32 %v824, %v826
    %v828 = vadd.f32 %v827, -0.4999988
    %v829 = vmul.f32 %v824, %v828
    %v830 = vadd.f32 1.0, %v829
    %v831 = vmul.f32 %v822, %v822
    %v832 = vmul.f32 %v831, -0.00019511016
    %v833 = vadd.f32 %v832, 0.008332121
    %v834 = vmul.f32 %v831, %v833
    %v835 = vadd.f32 %v834, -0.16666654
    %v836 = vmul.f32 %v831, %v835
    %v837 = vadd.f32 %v836, 1.0
    %v838 = vmul.f32 %v837, %v822
    %vm839 = vweird.f32 %v540
    %v840 = vand.u32 %v823, 3
    %vm841 = vcmp.lt.s32.totalorder %v840, 2
    %vm842 = vcmp.eq.s32.totalorder %v840, 0
    %v843 = vxor.u32 %v838, 2147483648
    %v844 = vsel %vm842, %v830, %v843
    %vm845 = vcmp.eq.s32.totalorder %v840, 2
    %v846 = vxor.u32 %v830, 2147483648
    %v847 = vsel %vm845, %v846, %v838
    %v848 = vsel %vm841, %v844, %v847
    %v849 = vsel %vm839, nan, %v848
    %v850 = vmul.f32 %v849, 2.0
    %s851 = sld [smem:[#allocation2 + $0x8f]]
    %s852 = sld [smem:[#allocation7 + $0x8f]]
    %s853 = sld [smem:[#allocation2 + $0x8e]]
    %v854 = vstv %s851
    %v855 = vmul.f32 %v850, %v854
    %v856 = vstv %s853
    %v857 = vadd.f32 %v856, %v855
    %s858 = sld [smem:[#allocation7 + $0x8e]]
    %v859 = vstv %s852
    %v860 = vmul.f32 %v850, %v859
    %v861 = vstv %s858
    %v862 = vadd.f32 %v861, %v860
    %s863 = sld [smem:[#allocation2 + $0x8d]]
    %v864 = vmul.f32 %v850, %v857
    %v865 = vstv %s863
    %v866 = vadd.f32 %v865, %v864
    %v867 = vsub.f32 %v866, %v854
    %s868 = sld [smem:[#allocation7 + $0x8d]]
    %v869 = vmul.f32 %v850, %v862
    %v870 = vstv %s868
    %v871 = vadd.f32 %v870, %v869
    %v872 = vsub.f32 %v871, %v859
    %s873 = sld [smem:[#allocation2 + $0x8c]]
    %v874 = vmul.f32 %v850, %v867
    %v875 = vstv %s873
    %v876 = vadd.f32 %v875, %v874
    %v877 = vsub.f32 %v876, %v857
    %s878 = sld [smem:[#allocation7 + $0x8c]]
    %v879 = vmul.f32 %v850, %v872
    %v880 = vstv %s878
    %v881 = vadd.f32 %v880, %v879
    %v882 = vsub.f32 %v881, %v862
    %s883 = sld [smem:[#allocation2 + $0x8b]]
    %v884 = vmul.f32 %v850, %v877
    %v885 = vstv %s883
    %v886 = vadd.f32 %v885, %v884
    %v887 = vsub.f32 %v886, %v867
    %s888 = sld [smem:[#allocation7 + $0x8b]]
    %v889 = vmul.f32 %v850, %v882
    %v890 = vstv %s888
    %v891 = vadd.f32 %v890, %v889
    %v892 = vsub.f32 %v891, %v872
    %s893 = sld [smem:[#allocation2 + $0x8a]]
    %v894 = vmul.f32 %v850, %v887
    %v895 = vstv %s893
    %v896 = vadd.f32 %v895, %v894
    %v897 = vsub.f32 %v896, %v877
    %s898 = sld [smem:[#allocation7 + $0x8a]]
    %v899 = vmul.f32 %v850, %v892
    %v900 = vstv %s898
    %v901 = vadd.f32 %v900, %v899
    %v902 = vsub.f32 %v901, %v882
    %s903 = sld [smem:[#allocation2 + $0x89]]
    %v904 = vmul.f32 %v850, %v897
    %v905 = vstv %s903
    %v906 = vadd.f32 %v905, %v904
    %v907 = vsub.f32 %v906, %v887
    %s908 = sld [smem:[#allocation7 + $0x89]]
    %v909 = vmul.f32 %v850, %v902
    %v910 = vstv %s908
    %v911 = vadd.f32 %v910, %v909
    %v912 = vsub.f32 %v911, %v892
    %s913 = sld [smem:[#allocation2 + $0x88]]
    %v914 = vmul.f32 %v850, %v907
    %v915 = vstv %s913
    %v916 = vadd.f32 %v915, %v914
    %v917 = vsub.f32 %v916, %v897
    %s918 = sld [smem:[#allocation7 + $0x88]]
    %v919 = vmul.f32 %v850, %v912
    %v920 = vstv %s918
    %v921 = vadd.f32 %v920, %v919
    %v922 = vsub.f32 %v921, %v902
    %s923 = sld [smem:[#allocation2 + $0x87]]
    %v924 = vmul.f32 %v850, %v917
    %v925 = vstv %s923
    %v926 = vadd.f32 %v925, %v924
    %v927 = vsub.f32 %v926, %v907
    %s928 = sld [smem:[#allocation7 + $0x87]]
    %v929 = vmul.f32 %v850, %v922
    %v930 = vstv %s928
    %v931 = vadd.f32 %v930, %v929
    %v932 = vsub.f32 %v931, %v912
    %s933 = sld [smem:[#allocation2 + $0x86]]
    %v934 = vmul.f32 %v850, %v927
    %v935 = vstv %s933
    %v936 = vadd.f32 %v935, %v934
    %v937 = vsub.f32 %v936, %v917
    %s938 = sld [smem:[#allocation7 + $0x86]]
    %v939 = vmul.f32 %v850, %v932
    %v940 = vstv %s938
    %v941 = vadd.f32 %v940, %v939
    %v942 = vsub.f32 %v941, %v922
    %s943 = sld [smem:[#allocation2 + $0x85]]
    %v944 = vmul.f32 %v850, %v937
    %v945 = vstv %s943
    %v946 = vadd.f32 %v945, %v944
    %v947 = vsub.f32 %v946, %v927
    %s948 = sld [smem:[#allocation7 + $0x85]]
    %v949 = vmul.f32 %v850, %v942
    %v950 = vstv %s948
    %v951 = vadd.f32 %v950, %v949
    %v952 = vsub.f32 %v951, %v932
    %s953 = sld [smem:[#allocation2 + $0x84]]
    %v954 = vmul.f32 %v850, %v947
    %v955 = vstv %s953
    %v956 = vadd.f32 %v955, %v954
    %v957 = vsub.f32 %v956, %v937
    %s958 = sld [smem:[#allocation7 + $0x84]]
    %v959 = vmul.f32 %v850, %v952
    %v960 = vstv %s958
    %v961 = vadd.f32 %v960, %v959
    %v962 = vsub.f32 %v961, %v942
    %s963 = sld [smem:[#allocation2 + $0x83]]
    %v964 = vmul.f32 %v850, %v957
    %v965 = vstv %s963
    %v966 = vadd.f32 %v965, %v964
    %v967 = vsub.f32 %v966, %v947
    %s968 = sld [smem:[#allocation7 + $0x83]]
    %v969 = vmul.f32 %v850, %v962
    %v970 = vstv %s968
    %v971 = vadd.f32 %v970, %v969
    %v972 = vsub.f32 %v971, %v952
    %s973 = sld [smem:[#allocation2 + $0x82]]
    %v974 = vmul.f32 %v850, %v967
    %v975 = vstv %s973
    %v976 = vadd.f32 %v975, %v974
    %v977 = vsub.f32 %v976, %v957
    %s978 = sld [smem:[#allocation7 + $0x82]]
    %v979 = vmul.f32 %v850, %v972
    %v980 = vstv %s978
    %v981 = vadd.f32 %v980, %v979
    %v982 = vsub.f32 %v981, %v962
    %s983 = sld [smem:[#allocation2 + $0x81]]
    %v984 = vmul.f32 %v850, %v977
    %v985 = vstv %s983
    %v986 = vadd.f32 %v985, %v984
    %v987 = vsub.f32 %v986, %v967
    %s988 = sld [smem:[#allocation7 + $0x81]]
    %v989 = vmul.f32 %v850, %v982
    %v990 = vstv %s988
    %v991 = vadd.f32 %v990, %v989
    %v992 = vsub.f32 %v991, %v972
    %s993 = sld [smem:[#allocation2 + $0x80]]
    %v994 = vmul.f32 %v850, %v987
    %v995 = vstv %s993
    %v996 = vadd.f32 %v995, %v994
    %v997 = vsub.f32 %v996, %v977
    %s998 = sld [smem:[#allocation7 + $0x80]]
    %v999 = vmul.f32 %v850, %v992
    %v1000 = vstv %s998
    %v1001 = vadd.f32 %v1000, %v999
    %v1002 = vsub.f32 %v1001, %v982
    %s1003 = sld [smem:[#allocation9 + $0x1]]
    %v1004 = vmul.f32 %v695, %v997
    %v1005 = vstv %s1003
    %v1006 = vadd.f32 %v1005, %v1004
    %v1007 = vmul.f32 %v849, %v1002
    %v1008 = vsub.f32 %v1007, %v992
    %v1009 = vadd.f32 %v1006, %v1008
    %s1010 = sadd.s32 0, 8
    %s1011 = scalar_lea.vmem [#allocation11], %s1010
    %1012 = vst [vmem:[%s1011] sm:$0xff] %v1009
    %v1013 = vmul.f32 %v540, %v69
    %v1014 = vand.u32 2147483647, %v1013
    %vm1015 = vcmp.le.f32.partialorder %v1014, 0.7853982
    %vm1016 = vcmp.lt.s32.totalorder %v1013, 0
    %v1017 = vand.u32 %v1013, 2139095040
    %v1018 = vshrl.u32 %v1017, 23
    %v1019 = vsub.s32 %v1018, 127
    %v1020 = vand.u32 2147483647, %v1013
    %v1021 = vand.u32 %v1020, 8388607
    %v1022 = vor.u32 %v1021, 8388608
    %v1023 = vsub.s32 0, %v1022
    %v1024 = vadd.s32 %v1019, 1
    %vm1025 = vcmp.gt.s32.totalorder %v1024, 0
    %v1026 = vsel %vm1025, %v1024, 0
    %v1027 = vshrl.u32 %v1026, 5
    %v1028 = vand.u32 %v1026, 31
    %v1029 = vsub.s32 32, %v1028
    %v1030 = vshrl.u32 683565275, %v1029
    %v1031 = vshll.u32 683565275, %v1028
    %v1032 = vshrl.u32 2475754826, %v1029
    %v1033 = vor.u32 %v1031, %v1032
    %v1034 = vshll.u32 2475754826, %v1028
    %v1035 = vshrl.u32 2131351028, %v1029
    %v1036 = vor.u32 %v1034, %v1035
    %v1037 = vshll.u32 2131351028, %v1028
    %v1038 = vshrl.u32 2102212464, %v1029
    %v1039 = vor.u32 %v1037, %v1038
    %v1040 = vshll.u32 2102212464, %v1028
    %v1041 = vshrl.u32 920167782, %v1029
    %v1042 = vor.u32 %v1040, %v1041
    %v1043 = vshll.u32 920167782, %v1028
    %v1044 = vshrl.u32 1326507024, %v1029
    %v1045 = vor.u32 %v1043, %v1044
    %vm1046 = vcmp.lt.s32.totalorder %v1027, 1
    %vm1047 = vcmp.lt.s32.totalorder %v1027, 2
    %vm1048 = vcmp.lt.s32.totalorder %v1027, 3
    %vm1049 = vcmp.lt.s32.totalorder %v1027, 4
    %v1050 = vsel %vm1046, %v1030, %v1033
    %v1051 = vsel %vm1049, %v1039, 2102212464
    %v1052 = vsel %vm1048, %v1036, %v1051
    %v1053 = vsel %vm1047, %v1050, %v1052
    %v1054 = vsel %vm1046, %v1033, %v1036
    %v1055 = vsel %vm1049, %v1042, 920167782
    %v1056 = vsel %vm1048, %v1039, %v1055
    %v1057 = vsel %vm1047, %v1054, %v1056
    %v1058 = vsel %vm1046, %v1036, %v1039
    %v1059 = vsel %vm1049, %v1045, 1326507024
    %v1060 = vsel %vm1048, %v1042, %v1059
    %v1061 = vsel %vm1047, %v1058, %v1060
    %v1062 = vshll.u32 %v1022, 8
    %v1063 = vand.u32 %v1062, 65535
    %v1064 = vshrl.u32 %v1062, 16
    %v1065 = vand.u32 %v1061, 65535
    %v1066 = vshrl.u32 %v1061, 16
    %v1067 = vmul.u32 %v1063, %v1065
    %v1068 = vmul.u32 %v1063, %v1066
    %v1069 = vmul.u32 %v1064, %v1065
    %v1070 = vmul.u32 %v1064, %v1066
    %v1071 = vshll.u32 %v1068, 16
    %v1072 = vshrl.u32 %v1068, 16
    %v1073 = vshll.u32 %v1069, 16
    %v1074 = vshrl.u32 %v1069, 16
    %vm1075 = vc.u32 %v1067, %v1071
    %v1076 = vsel %vm1075, 1, 0
    %v1077 = vadd.s32 %v1067, %v1071
    %v1078 = vadd.s32 %v1070, %v1076
    %vm1079 = vc.u32 %v1077, %v1073
    %v1080 = vsel %vm1079, 1, 0
    %v1081 = vadd.s32 %v1077, %v1073
    %v1082 = vadd.s32 %v1078, %v1080
    %v1083 = vadd.s32 %v1082, %v1072
    %v1084 = vadd.s32 %v1083, %v1074
    %v1085 = vand.u32 %v1062, 65535
    %v1086 = vshrl.u32 %v1062, 16
    %v1087 = vand.u32 %v1057, 65535
    %v1088 = vshrl.u32 %v1057, 16
    %v1089 = vmul.u32 %v1085, %v1087
    %v1090 = vmul.u32 %v1085, %v1088
    %v1091 = vmul.u32 %v1086, %v1087
    %v1092 = vmul.u32 %v1086, %v1088
    %v1093 = vshll.u32 %v1090, 16
    %v1094 = vshrl.u32 %v1090, 16
    %v1095 = vshll.u32 %v1091, 16
    %v1096 = vshrl.u32 %v1091, 16
    %vm1097 = vc.u32 %v1089, %v1093
    %v1098 = vsel %vm1097, 1, 0
    %v1099 = vadd.s32 %v1089, %v1093
    %v1100 = vadd.s32 %v1092, %v1098
    %vm1101 = vc.u32 %v1099, %v1095
    %v1102 = vsel %vm1101, 1, 0
    %v1103 = vadd.s32 %v1099, %v1095
    %v1104 = vadd.s32 %v1100, %v1102
    %v1105 = vadd.s32 %v1104, %v1094
    %v1106 = vadd.s32 %v1105, %v1096
    %v1107 = vmul.u32 %v1062, %v1053
    %v1108 = vadd.s32 %v1084, %v1103
    %vm1109 = vc.u32 %v1084, %v1103
    %v1110 = vadd.s32 %v1106, 1
    %v1111 = vsel %vm1109, %v1110, %v1106
    %v1112 = vadd.s32 %v1107, %v1111
    %v1113 = vadd.s32 %v1112, 536870912
    %v1114 = vshrl.u32 %v1113, 30
    %v1115 = vshll.u32 %v1114, 30
    %v1116 = vsub.s32 %v1112, %v1115
    %vm1117 = vcmp.lt.s32.totalorder %v1116, 0
    %v1118 = vsub.s32 0, %v1116
    %v1119 = vsel %vm1117, %v1118, %v1116
    %v1120 = vclz %v1119
    %v1121 = vsub.s32 %v1120, 2
    %vm1122 = vcmp.gt.s32.totalorder 0, %v1121
    %v1123 = vsel %vm1122, 0, %v1121
    %v1124 = vsub.s32 32, %v1123
    %v1125 = vshll.u32 %v1116, %v1123
    %v1126 = vshrl.u32 %v1108, %v1124
    %v1127 = vor.u32 %v1125, %v1126
    %v1128 = vsub.s32 4294967266, %v1123
    %v1129 = vadd.s32 %v1128, 127
    %v1130 = vshll.u32 %v1129, 23
    %v1131 = vor.u32 4788187, %v1130
    %v1132 = vand.u32 2147483647, %v1131
    %v1134 = vcvt.s32.f32 %v1127
    %v1135 = vmul.f32 %v1134, %v1132
    %v1136 = vxor.u32 %v1135, 2147483648
    %v1137 = vsel %vm1016, %v1136, %v1135
    %v1138 = vsub.s32 4, %v1114
    %v1139 = vsel %vm1016, %v1138, %v1114
    %v1140 = vsel %vm1015, %v1013, %v1137
    %v1141 = vsel %vm1015, 0, %v1139
    %v1142 = vmul.f32 %v1140, %v1140
    %v1143 = vmul.f32 %v1142, -0.001358992
    %v1144 = vadd.f32 %v1143, 0.041655596
    %v1145 = vmul.f32 %v1142, %v1144
    %v1146 = vadd.f32 %v1145, -0.4999988
    %v1147 = vmul.f32 %v1142, %v1146
    %v1148 = vadd.f32 1.0, %v1147
    %v1149 = vmul.f32 %v1140, %v1140
    %v1150 = vmul.f32 %v1149, -0.00019511016
    %v1151 = vadd.f32 %v1150, 0.008332121
    %v1152 = vmul.f32 %v1149, %v1151
    %v1153 = vadd.f32 %v1152, -0.16666654
    %v1154 = vmul.f32 %v1149, %v1153
    %v1155 = vadd.f32 %v1154, 1.0
    %v1156 = vmul.f32 %v1155, %v1140
    %vm1157 = vweird.f32 %v1013
    %v1158 = vadd.s32 %v1141, 3
    %v1159 = vand.u32 %v1158, 3
    %vm1160 = vcmp.lt.s32.totalorder %v1159, 2
    %vm1161 = vcmp.eq.s32.totalorder %v1159, 0
    %v1162 = vxor.u32 %v1156, 2147483648
    %v1163 = vsel %vm1161, %v1148, %v1162
    %vm1164 = vcmp.eq.s32.totalorder %v1159, 2
    %v1165 = vxor.u32 %v1148, 2147483648
    %v1166 = vsel %vm1164, %v1165, %v1156
    %v1167 = vsel %vm1160, %v1163, %v1166
    %v1168 = vsel %vm1157, nan, %v1167
    %v1169 = vand.u32 2147483647, %v1013
    %vm1170 = vcmp.le.f32.partialorder %v1169, 0.7853982
    %vm1171 = vcmp.lt.s32.totalorder %v1013, 0
    %v1172 = vand.u32 %v1013, 2139095040
    %v1173 = vshrl.u32 %v1172, 23
    %v1174 = vsub.s32 %v1173, 127
    %v1175 = vand.u32 2147483647, %v1013
    %v1176 = vand.u32 %v1175, 8388607
    %v1177 = vor.u32 %v1176, 8388608
    %v1178 = vsub.s32 0, %v1177
    %v1179 = vadd.s32 %v1174, 1
    %vm1180 = vcmp.gt.s32.totalorder %v1179, 0
    %v1181 = vsel %vm1180, %v1179, 0
    %v1182 = vshrl.u32 %v1181, 5
    %v1183 = vand.u32 %v1181, 31
    %v1184 = vsub.s32 32, %v1183
    %v1185 = vshrl.u32 683565275, %v1184
    %v1186 = vshll.u32 683565275, %v1183
    %v1187 = vshrl.u32 2475754826, %v1184
    %v1188 = vor.u32 %v1186, %v1187
    %v1189 = vshll.u32 2475754826, %v1183
    %v1190 = vshrl.u32 2131351028, %v1184
    %v1191 = vor.u32 %v1189, %v1190
    %v1192 = vshll.u32 2131351028, %v1183
    %v1193 = vshrl.u32 2102212464, %v1184
    %v1194 = vor.u32 %v1192, %v1193
    %v1195 = vshll.u32 2102212464, %v1183
    %v1196 = vshrl.u32 920167782, %v1184
    %v1197 = vor.u32 %v1195, %v1196
    %v1198 = vshll.u32 920167782, %v1183
    %v1199 = vshrl.u32 1326507024, %v1184
    %v1200 = vor.u32 %v1198, %v1199
    %vm1201 = vcmp.lt.s32.totalorder %v1182, 1
    %vm1202 = vcmp.lt.s32.totalorder %v1182, 2
    %vm1203 = vcmp.lt.s32.totalorder %v1182, 3
    %vm1204 = vcmp.lt.s32.totalorder %v1182, 4
    %v1205 = vsel %vm1201, %v1185, %v1188
    %v1206 = vsel %vm1204, %v1194, 2102212464
    %v1207 = vsel %vm1203, %v1191, %v1206
    %v1208 = vsel %vm1202, %v1205, %v1207
    %v1209 = vsel %vm1201, %v1188, %v1191
    %v1210 = vsel %vm1204, %v1197, 920167782
    %v1211 = vsel %vm1203, %v1194, %v1210
    %v1212 = vsel %vm1202, %v1209, %v1211
    %v1213 = vsel %vm1201, %v1191, %v1194
    %v1214 = vsel %vm1204, %v1200, 1326507024
    %v1215 = vsel %vm1203, %v1197, %v1214
    %v1216 = vsel %vm1202, %v1213, %v1215
    %v1217 = vshll.u32 %v1177, 8
    %v1218 = vand.u32 %v1217, 65535
    %v1219 = vshrl.u32 %v1217, 16
    %v1220 = vand.u32 %v1216, 65535
    %v1221 = vshrl.u32 %v1216, 16
    %v1222 = vmul.u32 %v1218, %v1220
    %v1223 = vmul.u32 %v1218, %v1221
    %v1224 = vmul.u32 %v1219, %v1220
    %v1225 = vmul.u32 %v1219, %v1221
    %v1226 = vshll.u32 %v1223, 16
    %v1227 = vshrl.u32 %v1223, 16
    %v1228 = vshll.u32 %v1224, 16
    %v1229 = vshrl.u32 %v1224, 16
    %vm1230 = vc.u32 %v1222, %v1226
    %v1231 = vsel %vm1230, 1, 0
    %v1232 = vadd.s32 %v1222, %v1226
    %v1233 = vadd.s32 %v1225, %v1231
    %vm1234 = vc.u32 %v1232, %v1228
    %v1235 = vsel %vm1234, 1, 0
    %v1236 = vadd.s32 %v1232, %v1228
    %v1237 = vadd.s32 %v1233, %v1235
    %v1238 = vadd.s32 %v1237, %v1227
    %v1239 = vadd.s32 %v1238, %v1229
    %v1240 = vand.u32 %v1217, 65535
    %v1241 = vshrl.u32 %v1217, 16
    %v1242 = vand.u32 %v1212, 65535
    %v1243 = vshrl.u32 %v1212, 16
    %v1244 = vmul.u32 %v1240, %v1242
    %v1245 = vmul.u32 %v1240, %v1243
    %v1246 = vmul.u32 %v1241, %v1242
    %v1247 = vmul.u32 %v1241, %v1243
    %v1248 = vshll.u32 %v1245, 16
    %v1249 = vshrl.u32 %v1245, 16
    %v1250 = vshll.u32 %v1246, 16
    %v1251 = vshrl.u32 %v1246, 16
    %vm1252 = vc.u32 %v1244, %v1248
    %v1253 = vsel %vm1252, 1, 0
    %v1254 = vadd.s32 %v1244, %v1248
    %v1255 = vadd.s32 %v1247, %v1253
    %vm1256 = vc.u32 %v1254, %v1250
    %v1257 = vsel %vm1256, 1, 0
    %v1258 = vadd.s32 %v1254, %v1250
    %v1259 = vadd.s32 %v1255, %v1257
    %v1260 = vadd.s32 %v1259, %v1249
    %v1261 = vadd.s32 %v1260, %v1251
    %v1262 = vmul.u32 %v1217, %v1208
    %v1263 = vadd.s32 %v1239, %v1258
    %vm1264 = vc.u32 %v1239, %v1258
    %v1265 = vadd.s32 %v1261, 1
    %v1266 = vsel %vm1264, %v1265, %v1261
    %v1267 = vadd.s32 %v1262, %v1266
    %v1268 = vadd.s32 %v1267, 536870912
    %v1269 = vshrl.u32 %v1268, 30
    %v1270 = vshll.u32 %v1269, 30
    %v1271 = vsub.s32 %v1267, %v1270
    %vm1272 = vcmp.lt.s32.totalorder %v1271, 0
    %v1273 = vsub.s32 0, %v1271
    %v1274 = vsel %vm1272, %v1273, %v1271
    %v1275 = vclz %v1274
    %v1276 = vsub.s32 %v1275, 2
    %vm1277 = vcmp.gt.s32.totalorder 0, %v1276
    %v1278 = vsel %vm1277, 0, %v1276
    %v1279 = vsub.s32 32, %v1278
    %v1280 = vshll.u32 %v1271, %v1278
    %v1281 = vshrl.u32 %v1263, %v1279
    %v1282 = vor.u32 %v1280, %v1281
    %v1283 = vsub.s32 4294967266, %v1278
    %v1284 = vadd.s32 %v1283, 127
    %v1285 = vshll.u32 %v1284, 23
    %v1286 = vor.u32 4788187, %v1285
    %v1287 = vand.u32 2147483647, %v1286
    %v1289 = vcvt.s32.f32 %v1282
    %v1290 = vmul.f32 %v1289, %v1287
    %v1291 = vxor.u32 %v1290, 2147483648
    %v1292 = vsel %vm1171, %v1291, %v1290
    %v1293 = vsub.s32 4, %v1269
    %v1294 = vsel %vm1171, %v1293, %v1269
    %v1295 = vsel %vm1170, %v1013, %v1292
    %v1296 = vsel %vm1170, 0, %v1294
    %v1297 = vmul.f32 %v1295, %v1295
    %v1298 = vmul.f32 %v1297, -0.001358992
    %v1299 = vadd.f32 %v1298, 0.041655596
    %v1300 = vmul.f32 %v1297, %v1299
    %v1301 = vadd.f32 %v1300, -0.4999988
    %v1302 = vmul.f32 %v1297, %v1301
    %v1303 = vadd.f32 1.0, %v1302
    %v1304 = vmul.f32 %v1295, %v1295
    %v1305 = vmul.f32 %v1304, -0.00019511016
    %v1306 = vadd.f32 %v1305, 0.008332121
    %v1307 = vmul.f32 %v1304, %v1306
    %v1308 = vadd.f32 %v1307, -0.16666654
    %v1309 = vmul.f32 %v1304, %v1308
    %v1310 = vadd.f32 %v1309, 1.0
    %v1311 = vmul.f32 %v1310, %v1295
    %vm1312 = vweird.f32 %v1013
    %v1313 = vand.u32 %v1296, 3
    %vm1314 = vcmp.lt.s32.totalorder %v1313, 2
    %vm1315 = vcmp.eq.s32.totalorder %v1313, 0
    %v1316 = vxor.u32 %v1311, 2147483648
    %v1317 = vsel %vm1315, %v1303, %v1316
    %vm1318 = vcmp.eq.s32.totalorder %v1313, 2
    %v1319 = vxor.u32 %v1303, 2147483648
    %v1320 = vsel %vm1318, %v1319, %v1311
    %v1321 = vsel %vm1314, %v1317, %v1320
    %v1322 = vsel %vm1312, nan, %v1321
    %v1323 = vmul.f32 %v1322, 2.0
    %s1324 = sld [smem:[#allocation2 + $0x10f]]
    %s1325 = sld [smem:[#allocation7 + $0x10f]]
    %s1326 = sld [smem:[#allocation2 + $0x10e]]
    %v1327 = vstv %s1324
    %v1328 = vmul.f32 %v1323, %v1327
    %v1329 = vstv %s1326
    %v1330 = vadd.f32 %v1329, %v1328
    %s1331 = sld [smem:[#allocation7 + $0x10e]]
    %v1332 = vstv %s1325
    %v1333 = vmul.f32 %v1323, %v1332
    %v1334 = vstv %s1331
    %v1335 = vadd.f32 %v1334, %v1333
    %s1336 = sld [smem:[#allocation2 + $0x10d]]
    %v1337 = vmul.f32 %v1323, %v1330
    %v1338 = vstv %s1336
    %v1339 = vadd.f32 %v1338, %v1337
    %v1340 = vsub.f32 %v1339, %v1327
    %s1341 = sld [smem:[#allocation7 + $0x10d]]
    %v1342 = vmul.f32 %v1323, %v1335
    %v1343 = vstv %s1341
    %v1344 = vadd.f32 %v1343, %v1342
    %v1345 = vsub.f32 %v1344, %v1332
    %s1346 = sld [smem:[#allocation2 + $0x10c]]
    %v1347 = vmul.f32 %v1323, %v1340
    %v1348 = vstv %s1346
    %v1349 = vadd.f32 %v1348, %v1347
    %v1350 = vsub.f32 %v1349, %v1330
    %s1351 = sld [smem:[#allocation7 + $0x10c]]
    %v1352 = vmul.f32 %v1323, %v1345
    %v1353 = vstv %s1351
    %v1354 = vadd.f32 %v1353, %v1352
    %v1355 = vsub.f32 %v1354, %v1335
    %s1356 = sld [smem:[#allocation2 + $0x10b]]
    %v1357 = vmul.f32 %v1323, %v1350
    %v1358 = vstv %s1356
    %v1359 = vadd.f32 %v1358, %v1357
    %v1360 = vsub.f32 %v1359, %v1340
    %s1361 = sld [smem:[#allocation7 + $0x10b]]
    %v1362 = vmul.f32 %v1323, %v1355
    %v1363 = vstv %s1361
    %v1364 = vadd.f32 %v1363, %v1362
    %v1365 = vsub.f32 %v1364, %v1345
    %s1366 = sld [smem:[#allocation2 + $0x10a]]
    %v1367 = vmul.f32 %v1323, %v1360
    %v1368 = vstv %s1366
    %v1369 = vadd.f32 %v1368, %v1367
    %v1370 = vsub.f32 %v1369, %v1350
    %s1371 = sld [smem:[#allocation7 + $0x10a]]
    %v1372 = vmul.f32 %v1323, %v1365
    %v1373 = vstv %s1371
    %v1374 = vadd.f32 %v1373, %v1372
    %v1375 = vsub.f32 %v1374, %v1355
    %s1376 = sld [smem:[#allocation2 + $0x109]]
    %v1377 = vmul.f32 %v1323, %v1370
    %v1378 = vstv %s1376
    %v1379 = vadd.f32 %v1378, %v1377
    %v1380 = vsub.f32 %v1379, %v1360
    %s1381 = sld [smem:[#allocation7 + $0x109]]
    %v1382 = vmul.f32 %v1323, %v1375
    %v1383 = vstv %s1381
    %v1384 = vadd.f32 %v1383, %v1382
    %v1385 = vsub.f32 %v1384, %v1365
    %s1386 = sld [smem:[#allocation2 + $0x108]]
    %v1387 = vmul.f32 %v1323, %v1380
    %v1388 = vstv %s1386
    %v1389 = vadd.f32 %v1388, %v1387
    %v1390 = vsub.f32 %v1389, %v1370
    %s1391 = sld [smem:[#allocation7 + $0x108]]
    %v1392 = vmul.f32 %v1323, %v1385
    %v1393 = vstv %s1391
    %v1394 = vadd.f32 %v1393, %v1392
    %v1395 = vsub.f32 %v1394, %v1375
    %s1396 = sld [smem:[#allocation2 + $0x107]]
    %v1397 = vmul.f32 %v1323, %v1390
    %v1398 = vstv %s1396
    %v1399 = vadd.f32 %v1398, %v1397
    %v1400 = vsub.f32 %v1399, %v1380
    %s1401 = sld [smem:[#allocation7 + $0x107]]
    %v1402 = vmul.f32 %v1323, %v1395
    %v1403 = vstv %s1401
    %v1404 = vadd.f32 %v1403, %v1402
    %v1405 = vsub.f32 %v1404, %v1385
    %s1406 = sld [smem:[#allocation2 + $0x106]]
    %v1407 = vmul.f32 %v1323, %v1400
    %v1408 = vstv %s1406
    %v1409 = vadd.f32 %v1408, %v1407
    %v1410 = vsub.f32 %v1409, %v1390
    %s1411 = sld [smem:[#allocation7 + $0x106]]
    %v1412 = vmul.f32 %v1323, %v1405
    %v1413 = vstv %s1411
    %v1414 = vadd.f32 %v1413, %v1412
    %v1415 = vsub.f32 %v1414, %v1395
    %s1416 = sld [smem:[#allocation2 + $0x105]]
    %v1417 = vmul.f32 %v1323, %v1410
    %v1418 = vstv %s1416
    %v1419 = vadd.f32 %v1418, %v1417
    %v1420 = vsub.f32 %v1419, %v1400
    %s1421 = sld [smem:[#allocation7 + $0x105]]
    %v1422 = vmul.f32 %v1323, %v1415
    %v1423 = vstv %s1421
    %v1424 = vadd.f32 %v1423, %v1422
    %v1425 = vsub.f32 %v1424, %v1405
    %s1426 = sld [smem:[#allocation2 + $0x104]]
    %v1427 = vmul.f32 %v1323, %v1420
    %v1428 = vstv %s1426
    %v1429 = vadd.f32 %v1428, %v1427
    %v1430 = vsub.f32 %v1429, %v1410
    %s1431 = sld [smem:[#allocation7 + $0x104]]
    %v1432 = vmul.f32 %v1323, %v1425
    %v1433 = vstv %s1431
    %v1434 = vadd.f32 %v1433, %v1432
    %v1435 = vsub.f32 %v1434, %v1415
    %s1436 = sld [smem:[#allocation2 + $0x103]]
    %v1437 = vmul.f32 %v1323, %v1430
    %v1438 = vstv %s1436
    %v1439 = vadd.f32 %v1438, %v1437
    %v1440 = vsub.f32 %v1439, %v1420
    %s1441 = sld [smem:[#allocation7 + $0x103]]
    %v1442 = vmul.f32 %v1323, %v1435
    %v1443 = vstv %s1441
    %v1444 = vadd.f32 %v1443, %v1442
    %v1445 = vsub.f32 %v1444, %v1425
    %s1446 = sld [smem:[#allocation2 + $0x102]]
    %v1447 = vmul.f32 %v1323, %v1440
    %v1448 = vstv %s1446
    %v1449 = vadd.f32 %v1448, %v1447
    %v1450 = vsub.f32 %v1449, %v1430
    %s1451 = sld [smem:[#allocation7 + $0x102]]
    %v1452 = vmul.f32 %v1323, %v1445
    %v1453 = vstv %s1451
    %v1454 = vadd.f32 %v1453, %v1452
    %v1455 = vsub.f32 %v1454, %v1435
    %s1456 = sld [smem:[#allocation2 + $0x101]]
    %v1457 = vmul.f32 %v1323, %v1450
    %v1458 = vstv %s1456
    %v1459 = vadd.f32 %v1458, %v1457
    %v1460 = vsub.f32 %v1459, %v1440
    %s1461 = sld [smem:[#allocation7 + $0x101]]
    %v1462 = vmul.f32 %v1323, %v1455
    %v1463 = vstv %s1461
    %v1464 = vadd.f32 %v1463, %v1462
    %v1465 = vsub.f32 %v1464, %v1445
    %s1466 = sld [smem:[#allocation2 + $0x100]]
    %v1467 = vmul.f32 %v1323, %v1460
    %v1468 = vstv %s1466
    %v1469 = vadd.f32 %v1468, %v1467
    %v1470 = vsub.f32 %v1469, %v1450
    %s1471 = sld [smem:[#allocation7 + $0x100]]
    %v1472 = vmul.f32 %v1323, %v1465
    %v1473 = vstv %s1471
    %v1474 = vadd.f32 %v1473, %v1472
    %v1475 = vsub.f32 %v1474, %v1455
    %s1476 = sld [smem:[#allocation9 + $0x2]]
    %v1477 = vmul.f32 %v1168, %v1470
    %v1478 = vstv %s1476
    %v1479 = vadd.f32 %v1478, %v1477
    %v1480 = vmul.f32 %v1322, %v1475
    %v1481 = vsub.f32 %v1480, %v1465
    %v1482 = vadd.f32 %v1479, %v1481
    %s1483 = sadd.s32 0, 16
    %s1484 = scalar_lea.vmem [#allocation11], %s1483
    %1485 = vst [vmem:[%s1484] sm:$0xff] %v1482
    // Predicated region
    $region34: #{tpu_custom_call.1} parent=1 // pred_check
      _
    $region35: #{tpu_custom_call.1} parent=1 // pred_check_branch
      %1487 = sbr.rel (0) target = $region37
    $region36: #{tpu_custom_call.1} parent=1 // pred_region
      %1489 = vsyncadd [#allocation4], 0
      %s1490 = sshll.u32 [#allocation11], 4
      %s1491 = int_to_ptr.vmem [resolvable:$true] %s1490
      %s1492 = sshll.u32 %s4, 4
      %s1493 = int_to_ptr.hbm [resolvable:$true] %s1492
      %1498 = dma.vmem_to_hbm [thread:$0]  %s1491, 384, %s1493, [#allocation4], 128, 128, 8
    $region37: #{tpu_custom_call.1} parent=1 // pred_fallthru
      _
    // Predicated region
    $region38: #{tpu_custom_call.1} parent=1 // pred_check
      _
    $region39: #{tpu_custom_call.1} parent=1 // pred_check_branch
      %1500 = sbr.rel (0) target = $region41
    $region40: #{tpu_custom_call.1} parent=1 // pred_region
      %1502 = dma.done [#allocation4], 384
    $region41: #{tpu_custom_call.1} parent=1 // pred_fallthru
      _
    %1503 = vsyncpa [#allocation3], 1
    %1504 = vsyncpa [#allocation4], 1
    %1505 = vsyncpa [#allocation5], 1
    %1506 = vsyncpa [#allocation8], 1
    %1507 = vsyncpa [#allocation6], 1

</llo_original>
